<compile_context>
chip_gen: v5e
topology: v5e:2x2
jax: 0.10.0
libtpu: 0.0.40
codegen_flags: <defaults>
</compile_context>

<pallas_src>
import math
import jax
import jax.numpy as jnp
from jax import lax
from jax.experimental import pallas as pl
from jax.experimental.pallas import tpu as pltpu

# ---- module hyperparameters (match the PyTorch defaults) -------------------
H = 256          # d_model
T = 8            # number of learned queries
N_HEAD = 4
D_HEAD = H // N_HEAD
LN_EPS = 1e-5
NEG_INF = -1e9   # same finite value the PyTorch code uses for attn_mask; also
                 # used for key padding (avoids NaN on fully-masked rows)


# ---------------- fused decoder kernel (BB batch elements per grid step) ----
def _decoder_kernel(enc_ref, kb_ref, ab_ref, pk_ref, wqo_ref, wkv_ref,
                    pred_ref, aw_ref):
    # enc_ref : (BB, TL, H)  bf16     kb_ref : (BB, 1, TL) f32  (key-padding bias)
    # ab_ref  : (NH*T, TL)   f32      (causal bias, pre-tiled over heads)
    # pk_ref  : (R, H)       f32      [head_mask(NH*T); bk; bv; bo; ln_g; ln_b; wh(2); pad]
    # wqo_ref : (H+NH*T, H)  bf16     [Wo^T ; q_bd (block-diag, pre-scaled)]
    # wkv_ref : (H, 2H)      bf16     [Wk^T | Wv^T]
    # pred_ref: (BB*T, 2)    f32      aw_ref : (BB*T, TL) f32
    BB, TL, Hd = enc_ref.shape
    NHT = ab_ref.shape[0]            # N_HEAD * T
    Tq = NHT // N_HEAD

    # ---- fused K/V projection: one (BB*TL, H) @ (H, 2H) bf16 MXU matmul ----
    enc2d = enc_ref[...].reshape(BB * TL, Hd)
    kv = jnp.dot(enc2d, wkv_ref[...], preferred_element_type=jnp.float32)
    b_k = pk_ref[NHT + 0:NHT + 1, :]
    b_v = pk_ref[NHT + 1:NHT + 2, :]
    k_all = (kv[:, :Hd] + b_k).astype(jnp.bfloat16)     # (BB*TL, H) bf16 (scores)
    v_all = kv[:, Hd:] + b_v                            # (BB*TL, H) f32

    q_bd = wqo_ref[Hd:Hd + NHT, :]                      # (NH*T, H) bf16, pre-scaled
    head_mask = pk_ref[:NHT, :]                         # (NH*T, H) f32, 0/1 block mask
    ab = ab_ref[...]                                    # (NH*T, TL)

    ctx_parts = []                                      # per-batch (T, H) contexts
    aw_parts = []                                       # per-batch (T, TL) head-avg probs
    for b in range(BB):                                 # static unroll over batch block
        k_b = k_all[b * TL:(b + 1) * TL, :]             # (TL, H)
        v_b = v_all[b * TL:(b + 1) * TL, :]
        # all heads' scores in one MXU matmul: (NH*T, H) x (TL, H)^T -> (NH*T, TL)
        s = lax.dot_general(q_bd, k_b, (((1,), (1,)), ((), ())),
                            preferred_element_type=jnp.float32)
        s = s + ab + kb_ref[b]                          # + causal + key-padding bias
        m = jnp.max(s, axis=-1, keepdims=True)
        e = jnp.exp(s - m)
        p = e * pl.reciprocal(jnp.sum(e, axis=-1, keepdims=True), approx=True)

        # head-averaged attention weights: mean over head row-blocks
        p_sum = p[0:Tq, :]
        for n in range(1, N_HEAD):
            p_sum = p_sum + p[n * Tq:(n + 1) * Tq, :]
        aw_parts.append(p_sum * (1.0 / N_HEAD))         # (T, TL)

        # all heads' context in one matmul, then fold heads with the block mask
        pv = jnp.dot(p, v_b, preferred_element_type=jnp.float32)   # (NH*T, H)
        pvm = pv * head_mask
        ctx_b = pvm[0:Tq, :]
        for n in range(1, N_HEAD):
            ctx_b = ctx_b + pvm[n * Tq:(n + 1) * Tq, :]
        ctx_parts.append(ctx_b)                          # (T, H)

    ctx = jnp.concatenate(ctx_parts, axis=0)             # (BB*T, H) f32
    aw = jnp.concatenate(aw_parts, axis=0)                # (BB*T, TL) f32

    # ---- out_proj (single MXU matmul) + bias -------------------------------
    b_o = pk_ref[NHT + 2:NHT + 3, :]
    ln_g = pk_ref[NHT + 3:NHT + 4, :]
    ln_b = pk_ref[NHT + 4:NHT + 5, :]
    wh = pk_ref[NHT + 5:NHT + 7, :]                       # (2, H)

    attn = jnp.dot(ctx.astype(jnp.bfloat16), wqo_ref[:Hd, :],
                   preferred_element_type=jnp.float32) + b_o       # (BB*T, H)

    # ---- LayerNorm over H (f32) ---------------------------------------------
    mu = jnp.mean(attn, axis=-1, keepdims=True)
    xc = attn - mu
    var = jnp.mean(xc * xc, axis=-1, keepdims=True)
    y = xc * lax.rsqrt(var + LN_EPS) * ln_g + ln_b

    # ---- both prediction heads in one small matmul: (BB*T, H) x (2, H)^T ----
    pred_ref[...] = lax.dot_general(y, wh, (((1,), (1,)), ((), ())),
                                    preferred_element_type=jnp.float32)
    aw_ref[...] = aw


# ---------------- wrapper ----------------------------------------------------
def multi_task_decoder_forward(enc_tokens, mask, params, feature=False, block_b=None):
    """enc_tokens: (B, T*L, H) f32, mask: (B, L) bool (True = valid token)."""
    B, TL, Hd = enc_tokens.shape
    Tq = params["queries"].shape[0]
    L = TL // Tq
    dh = Hd // N_HEAD
    NHT = N_HEAD * Tq

    # --- batch block size: keep >=2 grid steps for megacore, up to 8 per step ---
    if block_b is None:
        block_b = 1 if B <= 1 else min(8, (B + 1) // 2)
    BB = int(block_b)
    nb = -(-B // BB)            # grid length
    Bp = nb * BB                # padded batch

    # ---- batch-invariant precompute (hoisted out of the per-batch grid) ----
    q = ((params["queries"] @ params["wq"].T + params["bq"])
         * (1.0 / math.sqrt(dh))).astype(jnp.float32)                      # (T, H)
    row_head = jnp.arange(NHT, dtype=jnp.int32) // Tq
    col_head = jnp.arange(Hd, dtype=jnp.int32) // dh
    head_mask = (row_head[:, None] == col_head[None, :]).astype(jnp.float32)  # (NH*T, H)
    q_bd = jnp.tile(q, (N_HEAD, 1)) * head_mask                             # block-diag query

    if feature:
        attn_bias = jnp.zeros((Tq, TL), jnp.float32)
    else:
        tok_time = jnp.arange(TL, dtype=jnp.int32) // L
        allow = tok_time[None, :] <= jnp.arange(Tq, dtype=jnp.int32)[:, None]
        attn_bias = jnp.where(allow, 0.0, NEG_INF).astype(jnp.float32)
    ab_tiled = jnp.tile(attn_bias, (N_HEAD, 1))                             # (NH*T, TL)

    # key_padding_mask -> additive 0 / -1e9, shape (B, 1, TL)
    key_bias = jnp.where(jnp.tile(mask, (1, Tq)), 0.0, NEG_INF).astype(jnp.float32)
    key_bias = key_bias[:, None, :]

    # packed f32 params: [head_mask; bk; bv; bo; ln_g; ln_b; wh] (+ row padding)
    wh = jnp.stack([params["w_loss"], params["w_inc"]], axis=0)             # (2, H)
    ppack = jnp.concatenate(
        [head_mask,
         params["bk"][None, :], params["bv"][None, :], params["bo"][None, :],
         params["ln_g"][None, :], params["ln_b"][None, :], wh],
        axis=0).astype(jnp.float32)
    pad_rows = (-ppack.shape[0]) % 8
    if pad_rows:
        ppack = jnp.concatenate([ppack, jnp.zeros((pad_rows, Hd), jnp.float32)], axis=0)

    # packed bf16 weights: [Wo^T ; q_bd] and fused K/V weights [Wk^T | Wv^T]
    wqo = jnp.concatenate([params["wo"].T, q_bd], axis=0).astype(jnp.bfloat16)   # (H+NH*T, H)
    w_kv = jnp.concatenate([params["wk"].T, params["wv"].T], axis=1).astype(jnp.bfloat16)

    enc_bf = enc_tokens.astype(jnp.bfloat16)
    if Bp != B:
        enc_bf = jnp.pad(enc_bf, ((0, Bp - B), (0, 0), (0, 0)))
        key_bias = jnp.pad(key_bias, ((0, Bp - B), (0, 0), (0, 0)))   # pad = "all valid"

    preds, aw = pl.pallas_call(
        _decoder_kernel,
        out_shape=(jax.ShapeDtypeStruct((Bp * Tq, 2), jnp.float32),
                   jax.ShapeDtypeStruct((Bp * Tq, TL), jnp.float32)),
        grid_spec=pltpu.PrefetchScalarGridSpec(
            num_scalar_prefetch=0,
            grid=(nb,),
            in_specs=[
                pl.BlockSpec((BB, TL, Hd), lambda b: (b, 0, 0)),     # enc (bf16)
                pl.BlockSpec((BB, 1, TL), lambda b: (b, 0, 0)),      # key padding bias
                pl.BlockSpec((NHT, TL), lambda b: (0, 0)),           # causal bias (head-tiled)
                pl.BlockSpec(ppack.shape, lambda b: (0, 0)),         # packed f32 params
                pl.BlockSpec(wqo.shape, lambda b: (0, 0)),           # [Wo^T ; q_bd] bf16
                pl.BlockSpec(w_kv.shape, lambda b: (0, 0)),          # fused K/V weights bf16
            ],
            out_specs=[
                pl.BlockSpec((BB * Tq, 2), lambda b: (b, 0)),
                pl.BlockSpec((BB * Tq, TL), lambda b: (b, 0)),
            ],
        ),
        compiler_params=pltpu.CompilerParams(dimension_semantics=("parallel",)),
    )(enc_bf, key_bias, ab_tiled, ppack, wqo, w_kv)

    preds = preds[: B * Tq].reshape(B, Tq, 2)
    loss_pred = preds[..., 0] + params["b_loss"]         # head biases added in glue
    inc_pred = preds[..., 1] + params["b_inc"]
    attn_w = aw[: B * Tq].reshape(B, Tq, TL)
    return loss_pred, inc_pred, attn_w


# ---------------- deterministic parameter construction ----------------------
def make_params(key):
    ks = jax.random.split(key, 14)
    s = 1.0 / math.sqrt(H)
    queries = jax.random.normal(ks[0], (T, H), jnp.float32)
    wq = jax.random.uniform(ks[1], (H, H), jnp.float32, -s, s)
    wk = jax.random.uniform(ks[2], (H, H), jnp.float32, -s, s)
    wv = jax.random.uniform(ks[3], (H, H), jnp.float32, -s, s)
    bq = jax.random.normal(ks[4], (H,), jnp.float32) * 0.02
    bk = jax.random.normal(ks[5], (H,), jnp.float32) * 0.02
    bv = jax.random.normal(ks[6], (H,), jnp.float32) * 0.02
    wo = jax.random.uniform(ks[7], (H, H), jnp.float32, -s, s)
    bo = jax.random.normal(ks[8], (H,), jnp.float32) * 0.02
    ln_g = 1.0 + 0.1 * jax.random.normal(ks[9], (H,), jnp.float32)
    ln_b = 0.1 * jax.random.normal(ks[10], (H,), jnp.float32)
    w_loss = jax.random.uniform(ks[11], (H,), jnp.float32, -s, s)
    w_inc = jax.random.uniform(ks[12], (H,), jnp.float32, -s, s)
    b_loss, b_inc = jax.random.normal(ks[13], (2,), jnp.float32) * 0.02
    return dict(queries=queries, wq=wq, wk=wk, wv=wv, bq=bq, bk=bk, bv=bv,
                wo=wo, bo=bo, ln_g=ln_g, ln_b=ln_b,
                w_loss=w_loss, w_inc=w_inc, b_loss=b_loss, b_inc=b_inc)


# ---------------- pure-JAX f32 reference (mirrors PyTorch forward) ----------
def ref_forward(enc, mask, p, feature=False):
    B, TL, Hd = enc.shape
    Tq = p["queries"].shape[0]
    L = TL // Tq
    dh = Hd // N_HEAD
    q = (p["queries"] @ p["wq"].T + p["bq"]) / math.sqrt(dh)               # (T, H)
    k = enc @ p["wk"].T + p["bk"]                                          # (B, TL, H)
    v = enc @ p["wv"].T + p["bv"]
    qh = q.reshape(Tq, N_HEAD, dh).transpose(1, 0, 2)                      # (NH, T, dh)
    kh = k.reshape(B, TL, N_HEAD, dh).transpose(0, 2, 1, 3)                # (B, NH, TL, dh)
    vh = v.reshape(B, TL, N_HEAD, dh).transpose(0, 2, 1, 3)
    scores = jnp.einsum('ntd,bnsd->bnts', qh, kh)                          # (B, NH, T, TL)
    tok_time = jnp.arange(TL) // L
    allow = tok_time[None, :] <= jnp.arange(Tq)[:, None]
    ab = jnp.zeros((Tq, TL)) if feature else jnp.where(allow, 0.0, NEG_INF)
    kb = jnp.where(jnp.tile(mask, (1, Tq)), 0.0, NEG_INF)                  # (B, TL)
    scores = scores + ab[None, None] + kb[:, None, None, :]
    pw = jax.nn.softmax(scores, axis=-1)
    ctx = jnp.einsum('bnts,bnsd->bntd', pw, vh)
    ctx = ctx.transpose(0, 2, 1, 3).reshape(B, Tq, Hd)
    attn_out = ctx @ p["wo"].T + p["bo"]
    mu = attn_out.mean(-1, keepdims=True)
    var = ((attn_out - mu) ** 2).mean(-1, keepdims=True)
    y = (attn_out - mu) / jnp.sqrt(var + LN_EPS) * p["ln_g"] + p["ln_b"]
    loss = y @ p["w_loss"] + p["b_loss"]                                   # (B, T)
    inc = y @ p["w_inc"] + p["b_inc"]
    return loss, inc, pw.mean(axis=1)                                      # attn_w (B, T, TL)


if __name__ == "__main__":
    B, L = 2, 8                 # small shapes; sequence length L per time step
    TL = T * L                  # 64 key/value tokens
    key = jax.random.PRNGKey(0)
    ke, kp = jax.random.split(key, 2)
    enc_tokens = jax.random.normal(ke, (B, TL, H), jnp.float32)
    # valid-token mask (True = keep); ensure at least one valid token per row
    mask = jnp.array([[True] * 6 + [False] * 2,
                      [True] * 8], dtype=bool)                             # (B, L)
    params = make_params(kp)

    loss_pred, inc_pred, attn_w = multi_task_decoder_forward(enc_tokens, mask, params)
    jax.block_until_ready((loss_pred, inc_pred, attn_w))

    loss_ref, inc_ref, aw_ref = ref_forward(enc_tokens, mask, params)
    assert loss_pred.shape == (B, T) and inc_pred.shape == (B, T)
    assert attn_w.shape == (B, T, TL)
    # bf16 matmul operands (f32 accumulation) -> loosened tolerance vs f32 reference
    assert jnp.allclose(loss_pred, loss_ref, atol=5e-2, rtol=5e-2)
    assert jnp.allclose(inc_pred, inc_ref, atol=5e-2, rtol=5e-2)
    assert jnp.allclose(attn_w, aw_ref, atol=5e-2, rtol=5e-2)
    print("KERNEL_OK")
</pallas_src>

<mosaic_0001>
module attributes {stable_mosaic.version = 11 : i64} {
  func.func @_decoder_kernel(%arg0: i32, %arg1: memref<1x64x256xbf16, #tpu.memory_space<vmem>>, %arg2: memref<1x1x64xf32, #tpu.memory_space<vmem>>, %arg3: memref<32x64xf32, #tpu.memory_space<vmem>>, %arg4: memref<40x256xf32, #tpu.memory_space<vmem>>, %arg5: memref<288x256xbf16, #tpu.memory_space<vmem>>, %arg6: memref<256x512xbf16, #tpu.memory_space<vmem>>, %arg7: memref<8x2xf32, #tpu.memory_space<vmem>>, %arg8: memref<8x64xf32, #tpu.memory_space<vmem>>) attributes {dimension_semantics = [#tpu.dimension_semantics<parallel>], iteration_bounds = array<i64: 2>, scalar_prefetch = 0 : i64, scratch_operands = 0 : i64, tpu.core_type = #tpu.core_type<tc>, window_params = [{transform_indices = @transform_0, window_bounds = array<i64: 1, 64, 256>}, {transform_indices = @transform_1, window_bounds = array<i64: 1, 1, 64>}, {pipeline_mode = #tpu.pipeline_mode<synchronous>, transform_indices = @transform_2, window_bounds = array<i64: 32, 64>}, {pipeline_mode = #tpu.pipeline_mode<synchronous>, transform_indices = @transform_3, window_bounds = array<i64: 40, 256>}, {pipeline_mode = #tpu.pipeline_mode<synchronous>, transform_indices = @transform_4, window_bounds = array<i64: 288, 256>}, {pipeline_mode = #tpu.pipeline_mode<synchronous>, transform_indices = @transform_5, window_bounds = array<i64: 256, 512>}, {transform_indices = @transform_6, window_bounds = array<i64: 8, 2>}, {transform_indices = @transform_7, window_bounds = array<i64: 8, 64>}]} {
    %c0 = arith.constant 0 : index
    %c0_0 = arith.constant 0 : index
    %c0_1 = arith.constant 0 : index
    %0 = vector.load %arg1[%c0, %c0_0, %c0_1] : memref<1x64x256xbf16, #tpu.memory_space<vmem>>, vector<1x64x256xbf16>
    %1 = vector.shape_cast %0 : vector<1x64x256xbf16> to vector<64x256xbf16>
    %c0_2 = arith.constant 0 : index
    %c0_3 = arith.constant 0 : index
    %2 = vector.load %arg6[%c0_2, %c0_3] : memref<256x512xbf16, #tpu.memory_space<vmem>>, vector<256x512xbf16>
    %cst = arith.constant dense<0.000000e+00> : vector<64x512xf32>
    %3 = tpu.matmul %1, %2, %cst {dimension_numbers = #tpu.dot_dimension_numbers<[1], [0], [0], [1], [0, 0, 1, 1], [], []>} : vector<64x256xbf16>, vector<256x512xbf16>, vector<64x512xf32> -> vector<64x512xf32>
    %c32 = arith.constant 32 : index
    %c0_4 = arith.constant 0 : index
    %4 = vector.load %arg4[%c32, %c0_4] : memref<40x256xf32, #tpu.memory_space<vmem>>, vector<1x256xf32>
    %c33 = arith.constant 33 : index
    %c0_5 = arith.constant 0 : index
    %5 = vector.load %arg4[%c33, %c0_5] : memref<40x256xf32, #tpu.memory_space<vmem>>, vector<1x256xf32>
    %6 = vector.extract_strided_slice %3 {offsets = [0, 0], sizes = [64, 256], strides = [1, 1]} : vector<64x512xf32> to vector<64x256xf32>
    %7 = vector.broadcast %4 : vector<1x256xf32> to vector<64x256xf32>
    %8 = arith.addf %6, %7 : vector<64x256xf32>
    %9 = arith.truncf %8 : vector<64x256xf32> to vector<64x256xbf16>
    %10 = vector.extract_strided_slice %3 {offsets = [0, 256], sizes = [64, 256], strides = [1, 1]} : vector<64x512xf32> to vector<64x256xf32>
    %11 = vector.broadcast %5 : vector<1x256xf32> to vector<64x256xf32>
    %12 = arith.addf %10, %11 : vector<64x256xf32>
    %c256 = arith.constant 256 : index
    %c0_6 = arith.constant 0 : index
    %13 = vector.load %arg5[%c256, %c0_6] : memref<288x256xbf16, #tpu.memory_space<vmem>>, vector<32x256xbf16>
    %c0_7 = arith.constant 0 : index
    %c0_8 = arith.constant 0 : index
    %14 = vector.load %arg4[%c0_7, %c0_8] : memref<40x256xf32, #tpu.memory_space<vmem>>, vector<32x256xf32>
    %c0_9 = arith.constant 0 : index
    %c0_10 = arith.constant 0 : index
    %15 = vector.load %arg3[%c0_9, %c0_10] : memref<32x64xf32, #tpu.memory_space<vmem>>, vector<32x64xf32>
    %cst_11 = arith.constant dense<0.000000e+00> : vector<32x64xf32>
    %16 = tpu.matmul %13, %9, %cst_11 {dimension_numbers = #tpu.dot_dimension_numbers<[1], [1], [0], [0], [0, 0, 1, 0], [], []>} : vector<32x256xbf16>, vector<64x256xbf16>, vector<32x64xf32> -> vector<32x64xf32>
    %17 = arith.addf %16, %15 : vector<32x64xf32>
    %c0_12 = arith.constant 0 : index
    %c0_13 = arith.constant 0 : index
    %c0_14 = arith.constant 0 : index
    %18 = vector.load %arg2[%c0_12, %c0_13, %c0_14] : memref<1x1x64xf32, #tpu.memory_space<vmem>>, vector<1x1x64xf32>
    %19 = vector.shape_cast %18 : vector<1x1x64xf32> to vector<1x64xf32>
    %20 = vector.broadcast %19 : vector<1x64xf32> to vector<32x64xf32>
    %21 = arith.addf %17, %20 : vector<32x64xf32>
    %cst_15 = arith.constant dense<0xFF800000> : vector<32xf32>
    %22 = vector.multi_reduction <maximumf>, %21, %cst_15 [1] : vector<32x64xf32> to vector<32xf32>
    %23 = vector.shape_cast %22 : vector<32xf32> to vector<32x1xf32>
    %24 = vector.broadcast %23 : vector<32x1xf32> to vector<32x64xf32>
    %25 = arith.subf %21, %24 : vector<32x64xf32>
    %26 = math.exp %25 : vector<32x64xf32>
    %cst_16 = arith.constant dense<0.000000e+00> : vector<32xf32>
    %27 = vector.multi_reduction <add>, %26, %cst_16 [1] : vector<32x64xf32> to vector<32xf32>
    %28 = vector.shape_cast %27 : vector<32xf32> to vector<32x1xf32>
    %29 = tpu.reciprocal %28 {approx = true} : vector<32x1xf32> -> vector<32x1xf32>
    %30 = vector.broadcast %29 : vector<32x1xf32> to vector<32x64xf32>
    %31 = arith.mulf %26, %30 : vector<32x64xf32>
    %32 = vector.extract_strided_slice %31 {offsets = [0, 0], sizes = [8, 64], strides = [1, 1]} : vector<32x64xf32> to vector<8x64xf32>
    %33 = vector.extract_strided_slice %31 {offsets = [8, 0], sizes = [8, 64], strides = [1, 1]} : vector<32x64xf32> to vector<8x64xf32>
    %34 = arith.addf %32, %33 : vector<8x64xf32>
    %35 = vector.extract_strided_slice %31 {offsets = [16, 0], sizes = [8, 64], strides = [1, 1]} : vector<32x64xf32> to vector<8x64xf32>
    %36 = arith.addf %34, %35 : vector<8x64xf32>
    %37 = vector.extract_strided_slice %31 {offsets = [24, 0], sizes = [8, 64], strides = [1, 1]} : vector<32x64xf32> to vector<8x64xf32>
    %38 = arith.addf %36, %37 : vector<8x64xf32>
    %cst_17 = arith.constant 2.500000e-01 : f32
    %39 = vector.broadcast %cst_17 : f32 to vector<8x64xf32>
    %40 = arith.mulf %38, %39 : vector<8x64xf32>
    %cst_18 = arith.constant dense<0.000000e+00> : vector<32x256xf32>
    %41 = tpu.matmul %31, %12, %cst_18 {dimension_numbers = #tpu.dot_dimension_numbers<[1], [0], [0], [1], [0, 0, 1, 1], [], []>} : vector<32x64xf32>, vector<64x256xf32>, vector<32x256xf32> -> vector<32x256xf32>
    %42 = arith.mulf %41, %14 : vector<32x256xf32>
    %43 = vector.extract_strided_slice %42 {offsets = [0, 0], sizes = [8, 256], strides = [1, 1]} : vector<32x256xf32> to vector<8x256xf32>
    %44 = vector.extract_strided_slice %42 {offsets = [8, 0], sizes = [8, 256], strides = [1, 1]} : vector<32x256xf32> to vector<8x256xf32>
    %45 = arith.addf %43, %44 : vector<8x256xf32>
    %46 = vector.extract_strided_slice %42 {offsets = [16, 0], sizes = [8, 256], strides = [1, 1]} : vector<32x256xf32> to vector<8x256xf32>
    %47 = arith.addf %45, %46 : vector<8x256xf32>
    %48 = vector.extract_strided_slice %42 {offsets = [24, 0], sizes = [8, 256], strides = [1, 1]} : vector<32x256xf32> to vector<8x256xf32>
    %49 = arith.addf %47, %48 : vector<8x256xf32>
    %c34 = arith.constant 34 : index
    %c0_19 = arith.constant 0 : index
    %50 = vector.load %arg4[%c34, %c0_19] : memref<40x256xf32, #tpu.memory_space<vmem>>, vector<1x256xf32>
    %c35 = arith.constant 35 : index
    %c0_20 = arith.constant 0 : index
    %51 = vector.load %arg4[%c35, %c0_20] : memref<40x256xf32, #tpu.memory_space<vmem>>, vector<1x256xf32>
    %c36 = arith.constant 36 : index
    %c0_21 = arith.constant 0 : index
    %52 = vector.load %arg4[%c36, %c0_21] : memref<40x256xf32, #tpu.memory_space<vmem>>, vector<1x256xf32>
    %c37 = arith.constant 37 : index
    %c0_22 = arith.constant 0 : index
    %53 = vector.load %arg4[%c37, %c0_22] : memref<40x256xf32, #tpu.memory_space<vmem>>, vector<2x256xf32>
    %54 = arith.truncf %49 : vector<8x256xf32> to vector<8x256xbf16>
    %c0_23 = arith.constant 0 : index
    %c0_24 = arith.constant 0 : index
    %55 = vector.load %arg5[%c0_23, %c0_24] : memref<288x256xbf16, #tpu.memory_space<vmem>>, vector<256x256xbf16>
    %cst_25 = arith.constant dense<0.000000e+00> : vector<8x256xf32>
    %56 = tpu.matmul %54, %55, %cst_25 {dimension_numbers = #tpu.dot_dimension_numbers<[1], [0], [0], [1], [0, 0, 1, 1], [], []>} : vector<8x256xbf16>, vector<256x256xbf16>, vector<8x256xf32> -> vector<8x256xf32>
    %57 = vector.broadcast %50 : vector<1x256xf32> to vector<8x256xf32>
    %58 = arith.addf %56, %57 : vector<8x256xf32>
    %cst_26 = arith.constant dense<0.000000e+00> : vector<8xf32>
    %59 = vector.multi_reduction <add>, %58, %cst_26 [1] : vector<8x256xf32> to vector<8xf32>
    %60 = vector.shape_cast %59 : vector<8xf32> to vector<8x1xf32>
    %cst_27 = arith.constant 2.560000e+02 : f32
    %61 = vector.broadcast %cst_27 : f32 to vector<8x1xf32>
    %62 = arith.divf %60, %61 : vector<8x1xf32>
    %63 = vector.broadcast %62 : vector<8x1xf32> to vector<8x256xf32>
    %64 = arith.subf %58, %63 : vector<8x256xf32>
    %65 = arith.mulf %64, %64 : vector<8x256xf32>
    %cst_28 = arith.constant dense<0.000000e+00> : vector<8xf32>
    %66 = vector.multi_reduction <add>, %65, %cst_28 [1] : vector<8x256xf32> to vector<8xf32>
    %67 = vector.shape_cast %66 : vector<8xf32> to vector<8x1xf32>
    %cst_29 = arith.constant 2.560000e+02 : f32
    %68 = vector.broadcast %cst_29 : f32 to vector<8x1xf32>
    %69 = arith.divf %67, %68 : vector<8x1xf32>
    %cst_30 = arith.constant 9.99999974E-6 : f32
    %70 = vector.broadcast %cst_30 : f32 to vector<8x1xf32>
    %71 = arith.addf %69, %70 : vector<8x1xf32>
    %72 = math.rsqrt %71 : vector<8x1xf32>
    %73 = vector.broadcast %72 : vector<8x1xf32> to vector<8x256xf32>
    %74 = arith.mulf %64, %73 : vector<8x256xf32>
    %75 = vector.broadcast %51 : vector<1x256xf32> to vector<8x256xf32>
    %76 = arith.mulf %74, %75 : vector<8x256xf32>
    %77 = vector.broadcast %52 : vector<1x256xf32> to vector<8x256xf32>
    %78 = arith.addf %76, %77 : vector<8x256xf32>
    %cst_31 = arith.constant dense<0.000000e+00> : vector<8x2xf32>
    %79 = tpu.matmul %78, %53, %cst_31 {dimension_numbers = #tpu.dot_dimension_numbers<[1], [1], [0], [0], [0, 0, 1, 0], [], []>} : vector<8x256xf32>, vector<2x256xf32>, vector<8x2xf32> -> vector<8x2xf32>
    %c0_32 = arith.constant 0 : index
    %c0_33 = arith.constant 0 : index
    %80 = vector.load %arg7[%c0_32, %c0_33] : memref<8x2xf32, #tpu.memory_space<vmem>>, vector<8x2xf32>
    tpu.vector_store %arg7[%c0_32, %c0_33], %79 {strides = array<i32>} : memref<8x2xf32, #tpu.memory_space<vmem>>, vector<8x2xf32>,
    %c0_34 = arith.constant 0 : index
    %c0_35 = arith.constant 0 : index
    %81 = vector.load %arg8[%c0_34, %c0_35] : memref<8x64xf32, #tpu.memory_space<vmem>>, vector<8x64xf32>
    tpu.vector_store %arg8[%c0_34, %c0_35], %40 {strides = array<i32>} : memref<8x64xf32, #tpu.memory_space<vmem>>, vector<8x64xf32>,
    return
  }
  func.func @transform_0(%arg0: i32) -> (i32, i32, i32) {
    %c0_i32 = arith.constant 0 : i32
    %c0_i32_0 = arith.constant 0 : i32
    %c0_i32_1 = arith.constant 0 : i32
    return %arg0, %c0_i32, %c0_i32_0 : i32, i32, i32
  }
  func.func @transform_1(%arg0: i32) -> (i32, i32, i32) {
    %c0_i32 = arith.constant 0 : i32
    %c0_i32_0 = arith.constant 0 : i32
    %c0_i32_1 = arith.constant 0 : i32
    return %arg0, %c0_i32, %c0_i32_0 : i32, i32, i32
  }
  func.func @transform_2(%arg0: i32) -> (i32, i32) {
    %c0_i32 = arith.constant 0 : i32
    %c0_i32_0 = arith.constant 0 : i32
    %c0_i32_1 = arith.constant 0 : i32
    return %c0_i32, %c0_i32_0 : i32, i32
  }
  func.func @transform_3(%arg0: i32) -> (i32, i32) {
    %c0_i32 = arith.constant 0 : i32
    %c0_i32_0 = arith.constant 0 : i32
    %c0_i32_1 = arith.constant 0 : i32
    return %c0_i32, %c0_i32_0 : i32, i32
  }
  func.func @transform_4(%arg0: i32) -> (i32, i32) {
    %c0_i32 = arith.constant 0 : i32
    %c0_i32_0 = arith.constant 0 : i32
    %c0_i32_1 = arith.constant 0 : i32
    return %c0_i32, %c0_i32_0 : i32, i32
  }
  func.func @transform_5(%arg0: i32) -> (i32, i32) {
    %c0_i32 = arith.constant 0 : i32
    %c0_i32_0 = arith.constant 0 : i32
    %c0_i32_1 = arith.constant 0 : i32
    return %c0_i32, %c0_i32_0 : i32, i32
  }
  func.func @transform_6(%arg0: i32) -> (i32, i32) {
    %c0_i32 = arith.constant 0 : i32
    %c0_i32_0 = arith.constant 0 : i32
    return %arg0, %c0_i32 : i32, i32
  }
  func.func @transform_7(%arg0: i32) -> (i32, i32) {
    %c0_i32 = arith.constant 0 : i32
    %c0_i32_0 = arith.constant 0 : i32
    return %arg0, %c0_i32 : i32, i32
  }
}

</mosaic_0001>

<llo_original>
// kernel: tpu_custom_call.1
$region0: #{tpu_custom_call.1}
  #allocation0 [shape = 'u32[]', space=smem, size = 0x4, offset = 0x4, fixed_abs, tag = 'smem constant byte address 0x4 - core index']
  #allocation1 [shape = 'u32[72,128]{1,0:T(1,128)}', space=vmem, size = 0x9000, scoped, tag = 'internal scratch']
  %s0 = inlined_call_operand.hbm [shape: bf16[2,64,256], index: 0, kind: input, shape index: {}]
  %s1 = inlined_call_operand.hbm [shape: f32[2,1,64], index: 1, kind: input, shape index: {}]
  %s2 = inlined_call_operand.hbm [shape: f32[32,64], index: 2, kind: input, shape index: {}]
  %s3 = inlined_call_operand.hbm [shape: f32[40,256], index: 3, kind: input, shape index: {}]
  %s4 = inlined_call_operand.hbm [shape: bf16[288,256], index: 4, kind: input, shape index: {}]
  %s5 = inlined_call_operand.hbm [shape: bf16[256,512], index: 5, kind: input, shape index: {}]
  %s6 = inlined_call_operand.vmem [shape: f32[16,2], index: 6, kind: output, shape index: {0}]
  %s7 = inlined_call_operand.hbm [shape: f32[16,64], index: 7, kind: output, shape index: {1}]
  %8 = xla_tuple %s6, %s7
  %s9 = sld [smem:[#allocation0]]
  $region89: #{tpu_custom_call.1} parent=0
    _
  %s11 = ssub.s32 1, %s9
  %s12 = scalar_select 0, %s11, %s9
  $region1: #{tpu_custom_call.1} parent=0
    #allocation2 [shape = 'u8[65536]{0}', space=vmem, size = 0x10000, scoped, tag = 'input window, operand 0']
    #allocation3 [shape = 's32[2]{0}', space=sflag, size = 0x8, scoped, tag = 'scoped memory for tpu_custom_call.1']
    #allocation4 [shape = 's32[2]{0}', space=sflag, size = 0x8, scoped, tag = 'scoped memory for tpu_custom_call.1']
    #allocation5 [shape = 'u8[1024]{0}', space=vmem, size = 0x400, scoped, tag = 'input window, operand 1']
    #allocation6 [shape = 's32[2]{0}', space=sflag, size = 0x8, scoped, tag = 'scoped memory for tpu_custom_call.1']
    #allocation7 [shape = 'u8[16384]{0}', space=vmem, size = 0x4000, scoped, tag = 'input window, operand 2, single buffered']
    #allocation8 [shape = 'u8[40960]{0}', space=vmem, size = 0xa000, scoped, tag = 'input window, operand 3, single buffered']
    #allocation9 [shape = 's32[1]{0}', space=sflag, size = 0x4, scoped, tag = 'scoped memory for tpu_custom_call.1']
    #allocation10 [shape = 'u8[147456]{0}', space=vmem, size = 0x24000, scoped, tag = 'input window, operand 4, single buffered']
    #allocation11 [shape = 'u8[262144]{0}', space=vmem, size = 0x40000, scoped, tag = 'input window, operand 5, single buffered']
    #allocation12 [shape = 's32[1]{0}', space=sflag, size = 0x4, scoped, tag = 'scoped memory for tpu_custom_call.1']
    #allocation13 [shape = 'u8[8192]{0}', space=vmem, size = 0x2000, scoped, tag = 'output window, operand 1']
    %13 = vsyncpa [#allocation3], 0
    %s14 = scalar_lea.sflag [#allocation3], 1
    %15 = vsyncpa %s14, 0
    %16 = vsyncpa [#allocation6], 0
    %s17 = scalar_lea.sflag [#allocation6], 1
    %18 = vsyncpa %s17, 0
    %19 = vsyncpa [#allocation9], 0
    %20 = vsyncpa [#allocation12], 0
    %21 = vsyncpa [#allocation4], 0
    %s22 = scalar_lea.sflag [#allocation4], 1
    %23 = vsyncpa %s22, 0
    loop: start=0, step=1, limit=4
    $region2: #{tpu_custom_call.1} parent=1 // loop_pre_header
      _
    $region3: #{tpu_custom_call.1} parent=1 // loop_header
      %s25 = sphi 0, %s29
      %p26 = scmp.ge.s32.totalorder %s25, 4
      %s35 = sphi 0, %s37
      %s38 = sphi 0, %s35
      %s39 = sphi 0, %s38
      %s55 = sphi 0, %s39
      %s61 = sphi 0, %s63
      %s64 = sphi 0, %s61
      %s65 = sphi 0, %s64
      %s81 = sphi 0, %s65
      %s85 = sphi 0, %s85
      %s87 = sphi 0, %s85
      %s88 = sphi 0, %s87
      %s102 = sphi 0, %s88
      %s106 = sphi 0, %s106
      %s108 = sphi 0, %s106
      %s109 = sphi 0, %s108
      %s123 = sphi 0, %s109
      %s127 = sphi 0, %s127
      %s129 = sphi 0, %s127
      %s130 = sphi 0, %s129
      %s144 = sphi 0, %s130
      %s148 = sphi 0, %s148
      %s150 = sphi 0, %s148
      %s151 = sphi 0, %s150
      %s165 = sphi 0, %s151
      %s171 = sphi 0, %s173
      %s174 = sphi 0, %s171
      %s175 = sphi 0, %s174
      %s191 = sphi 0, %s175
      %s197 = sphi 0, %s199
      %s200 = sphi 0, %s197
      %s201 = sphi 0, %s200
      %s217 = sphi 0, %s201
    $region4: #{tpu_custom_call.1} parent=1 // loop_header_branch
      %28 = sbr.rel (%p26) target = $region8
    $region5: #{tpu_custom_call.1} parent=1 // loop_body
      %s30 = ssub.s32 %s25, 1
      %s31 = ssub.s32 %s25, 2
      %s32 = sadd.s32 %s25, 1
      %s33 = ssub.s32 %s25, %s32
      %p34 = scmp.eq.s32.totalorder %s33, 0
      %s36 = sadd.s32 %s35, 1
      %s37 = scalar_select %p34, %s35, %s36
      %p40 = pneg %p34
      %p41 = scmp.eq.s32.totalorder %s25, 1
      %p42 = por %p40, %p41
      %p43 = scmp.ne.s32.totalorder %s35, %s38
      %p44 = scmp.eq.s32.totalorder %s25, 0
      %p45 = por %p43, %p44
      %p46 = scmp.ne.s32.totalorder %s35, %s38
      %p47 = scmp.eq.s32.totalorder %s30, 1
      %p48 = por %p46, %p47
      %p49 = scmp.ne.s32.totalorder %s38, %s39
      %p50 = scmp.eq.s32.totalorder %s30, 0
      %p51 = por %p49, %p50
      %p52 = scmp.ne.s32.totalorder %s38, %s39
      %p53 = scmp.eq.s32.totalorder %s31, 1
      %p54 = por %p52, %p53
      %p56 = scmp.ne.s32.totalorder %s39, %s55
      %p57 = scmp.eq.s32.totalorder %s31, 0
      %p58 = por %p56, %p57
      %s59 = ssub.s32 %s25, %s32
      %p60 = scmp.eq.s32.totalorder %s59, 0
      %s62 = sadd.s32 %s61, 1
      %s63 = scalar_select %p60, %s61, %s62
      %p66 = pneg %p60
      %p67 = scmp.eq.s32.totalorder %s25, 1
      %p68 = por %p66, %p67
      %p69 = scmp.ne.s32.totalorder %s61, %s64
      %p70 = scmp.eq.s32.totalorder %s25, 0
      %p71 = por %p69, %p70
      %p72 = scmp.ne.s32.totalorder %s61, %s64
      %p73 = scmp.eq.s32.totalorder %s30, 1
      %p74 = por %p72, %p73
      %p75 = scmp.ne.s32.totalorder %s64, %s65
      %p76 = scmp.eq.s32.totalorder %s30, 0
      %p77 = por %p75, %p76
      %p78 = scmp.ne.s32.totalorder %s64, %s65
      %p79 = scmp.eq.s32.totalorder %s31, 1
      %p80 = por %p78, %p79
      %p82 = scmp.ne.s32.totalorder %s65, %s81
      %p83 = scmp.eq.s32.totalorder %s31, 0
      %p84 = por %p82, %p83
      %s86 = sadd.s32 %s85, 1
      %p89 = scmp.eq.s32.totalorder %s25, 1
      %p90 = scmp.ne.s32.totalorder %s85, %s87
      %p91 = scmp.eq.s32.totalorder %s25, 0
      %p92 = por %p90, %p91
      %p93 = scmp.ne.s32.totalorder %s85, %s87
      %p94 = scmp.eq.s32.totalorder %s30, 1
      %p95 = por %p93, %p94
      %p96 = scmp.ne.s32.totalorder %s87, %s88
      %p97 = scmp.eq.s32.totalorder %s30, 0
      %p98 = por %p96, %p97
      %p99 = scmp.ne.s32.totalorder %s87, %s88
      %p100 = scmp.eq.s32.totalorder %s31, 1
      %p101 = por %p99, %p100
      %p103 = scmp.ne.s32.totalorder %s88, %s102
      %p104 = scmp.eq.s32.totalorder %s31, 0
      %p105 = por %p103, %p104
      %s107 = sadd.s32 %s106, 1
      %p110 = scmp.eq.s32.totalorder %s25, 1
      %p111 = scmp.ne.s32.totalorder %s106, %s108
      %p112 = scmp.eq.s32.totalorder %s25, 0
      %p113 = por %p111, %p112
      %p114 = scmp.ne.s32.totalorder %s106, %s108
      %p115 = scmp.eq.s32.totalorder %s30, 1
      %p116 = por %p114, %p115
      %p117 = scmp.ne.s32.totalorder %s108, %s109
      %p118 = scmp.eq.s32.totalorder %s30, 0
      %p119 = por %p117, %p118
      %p120 = scmp.ne.s32.totalorder %s108, %s109
      %p121 = scmp.eq.s32.totalorder %s31, 1
      %p122 = por %p120, %p121
      %p124 = scmp.ne.s32.totalorder %s109, %s123
      %p125 = scmp.eq.s32.totalorder %s31, 0
      %p126 = por %p124, %p125
      %s128 = sadd.s32 %s127, 1
      %p131 = scmp.eq.s32.totalorder %s25, 1
      %p132 = scmp.ne.s32.totalorder %s127, %s129
      %p133 = scmp.eq.s32.totalorder %s25, 0
      %p134 = por %p132, %p133
      %p135 = scmp.ne.s32.totalorder %s127, %s129
      %p136 = scmp.eq.s32.totalorder %s30, 1
      %p137 = por %p135, %p136
      %p138 = scmp.ne.s32.totalorder %s129, %s130
      %p139 = scmp.eq.s32.totalorder %s30, 0
      %p140 = por %p138, %p139
      %p141 = scmp.ne.s32.totalorder %s129, %s130
      %p142 = scmp.eq.s32.totalorder %s31, 1
      %p143 = por %p141, %p142
      %p145 = scmp.ne.s32.totalorder %s130, %s144
      %p146 = scmp.eq.s32.totalorder %s31, 0
      %p147 = por %p145, %p146
      %s149 = sadd.s32 %s148, 1
      %p152 = scmp.eq.s32.totalorder %s25, 1
      %p153 = scmp.ne.s32.totalorder %s148, %s150
      %p154 = scmp.eq.s32.totalorder %s25, 0
      %p155 = por %p153, %p154
      %p156 = scmp.ne.s32.totalorder %s148, %s150
      %p157 = scmp.eq.s32.totalorder %s30, 1
      %p158 = por %p156, %p157
      %p159 = scmp.ne.s32.totalorder %s150, %s151
      %p160 = scmp.eq.s32.totalorder %s30, 0
      %p161 = por %p159, %p160
      %p162 = scmp.ne.s32.totalorder %s150, %s151
      %p163 = scmp.eq.s32.totalorder %s31, 1
      %p164 = por %p162, %p163
      %p166 = scmp.ne.s32.totalorder %s151, %s165
      %p167 = scmp.eq.s32.totalorder %s31, 0
      %p168 = por %p166, %p167
      %s169 = ssub.s32 %s25, %s32
      %p170 = scmp.eq.s32.totalorder %s169, 0
      %s172 = sadd.s32 %s171, 1
      %s173 = scalar_select %p170, %s171, %s172
      %p176 = pneg %p170
      %p177 = scmp.eq.s32.totalorder %s25, 1
      %p178 = por %p176, %p177
      %p179 = scmp.ne.s32.totalorder %s171, %s174
      %p180 = scmp.eq.s32.totalorder %s25, 0
      %p181 = por %p179, %p180
      %p182 = scmp.ne.s32.totalorder %s171, %s174
      %p183 = scmp.eq.s32.totalorder %s30, 1
      %p184 = por %p182, %p183
      %p185 = scmp.ne.s32.totalorder %s174, %s175
      %p186 = scmp.eq.s32.totalorder %s30, 0
      %p187 = por %p185, %p186
      %p188 = scmp.ne.s32.totalorder %s174, %s175
      %p189 = scmp.eq.s32.totalorder %s31, 1
      %p190 = por %p188, %p189
      %p192 = scmp.ne.s32.totalorder %s175, %s191
      %p193 = scmp.eq.s32.totalorder %s31, 0
      %p194 = por %p192, %p193
      %s195 = ssub.s32 %s25, %s32
      %p196 = scmp.eq.s32.totalorder %s195, 0
      %s198 = sadd.s32 %s197, 1
      %s199 = scalar_select %p196, %s197, %s198
      %p202 = pneg %p196
      %p203 = scmp.eq.s32.totalorder %s25, 1
      %p204 = por %p202, %p203
      %p205 = scmp.ne.s32.totalorder %s197, %s200
      %p206 = scmp.eq.s32.totalorder %s25, 0
      %p207 = por %p205, %p206
      %p208 = scmp.ne.s32.totalorder %s197, %s200
      %p209 = scmp.eq.s32.totalorder %s30, 1
      %p210 = por %p208, %p209
      %p211 = scmp.ne.s32.totalorder %s200, %s201
      %p212 = scmp.eq.s32.totalorder %s30, 0
      %p213 = por %p211, %p212
      %p214 = scmp.ne.s32.totalorder %s200, %s201
      %p215 = scmp.eq.s32.totalorder %s31, 1
      %p216 = por %p214, %p215
      %p218 = scmp.ne.s32.totalorder %s201, %s217
      %p219 = scmp.eq.s32.totalorder %s31, 0
      %p220 = por %p218, %p219
      %p221 = scmp.le.s32.totalorder 1, %s25
      %p222 = scmp.lt.s32.totalorder %s25, 3
      %p223 = pnand %p221, %p222
      %p224 = pneg %p223
      // Predicated region
      $region9: #{tpu_custom_call.1} parent=5 // pred_check
        _
      $region10: #{tpu_custom_call.1} parent=5 // pred_check_branch
        %226 = sbr.rel (%p223) target = $region12
      $region11: #{tpu_custom_call.1} parent=5 // pred_region
        %s227 = ssub.s32 %s25, 1
        // Predicated region
        $region13: #{tpu_custom_call.1} parent=11 // pred_check
          %p228 = pneg %p98
        $region14: #{tpu_custom_call.1} parent=11 // pred_check_branch
          %230 = sbr.rel (%p228) target = $region16
        $region15: #{tpu_custom_call.1} parent=11 // pred_region
          %232 = vsyncadd [#allocation6], 0
          %s233 = sshll.u32 %s2, 4
          %s234 = int_to_ptr.hbm [resolvable:$true] %s233
          %s235 = sshll.u32 [#allocation7], 4
          %s236 = int_to_ptr.vmem [resolvable:$true] %s235
          %241 = dma.hbm_to_vmem [thread:$0]  %s234, 512, %s236, [#allocation6], 128, 128, 8
        $region16: #{tpu_custom_call.1} parent=11 // pred_fallthru
          _
        // Predicated region
        $region17: #{tpu_custom_call.1} parent=11 // pred_check
          %p242 = pneg %p119
        $region18: #{tpu_custom_call.1} parent=11 // pred_check_branch
          %244 = sbr.rel (%p242) target = $region20
        $region19: #{tpu_custom_call.1} parent=11 // pred_region
          %246 = vsyncadd [#allocation9], 0
          %s247 = sshll.u32 %s3, 4
          %s248 = int_to_ptr.hbm [resolvable:$true] %s247
          %s249 = sshll.u32 [#allocation8], 4
          %s250 = int_to_ptr.vmem [resolvable:$true] %s249
          %255 = dma.hbm_to_vmem [thread:$0]  %s248, 1280, %s250, [#allocation9], 256, 256, 16
        $region20: #{tpu_custom_call.1} parent=11 // pred_fallthru
          _
        // Predicated region
        $region21: #{tpu_custom_call.1} parent=11 // pred_check
          %p256 = pneg %p140
        $region22: #{tpu_custom_call.1} parent=11 // pred_check_branch
          %258 = sbr.rel (%p256) target = $region24
        $region23: #{tpu_custom_call.1} parent=11 // pred_region
          %260 = vsyncadd [#allocation9], 0
          %s261 = sshll.u32 %s4, 4
          %s262 = int_to_ptr.hbm [resolvable:$true] %s261
          %s263 = sshll.u32 [#allocation10], 4
          %s264 = int_to_ptr.vmem [resolvable:$true] %s263
          %269 = dma.hbm_to_vmem [thread:$0]  %s262, 4608, %s264, [#allocation9], 128, 128, 8
        $region24: #{tpu_custom_call.1} parent=11 // pred_fallthru
          _
        // Predicated region
        $region25: #{tpu_custom_call.1} parent=11 // pred_check
          %p270 = pneg %p161
        $region26: #{tpu_custom_call.1} parent=11 // pred_check_branch
          %272 = sbr.rel (%p270) target = $region28
        $region27: #{tpu_custom_call.1} parent=11 // pred_region
          %274 = vsyncadd [#allocation12], 0
          %s275 = sshll.u32 %s5, 4
          %s276 = int_to_ptr.hbm [resolvable:$true] %s275
          %s277 = sshll.u32 [#allocation11], 4
          %s278 = int_to_ptr.vmem [resolvable:$true] %s277
          %283 = dma.hbm_to_vmem [thread:$0]  %s276, 8192, %s278, [#allocation12], 256, 256, 16
        $region28: #{tpu_custom_call.1} parent=11 // pred_fallthru
          _
      $region12: #{tpu_custom_call.1} parent=5 // pred_fallthru
        _
      %p284 = scmp.lt.s32.totalorder %s25, 2
      // Predicated region
      $region29: #{tpu_custom_call.1} parent=5 // pred_check
        %p285 = pneg %p284
      $region30: #{tpu_custom_call.1} parent=5 // pred_check_branch
        %287 = sbr.rel (%p285) target = $region32
      $region31: #{tpu_custom_call.1} parent=5 // pred_region
        // Predicated region
        $region33: #{tpu_custom_call.1} parent=31 // pred_check
          %p288 = pneg %p45
        $region34: #{tpu_custom_call.1} parent=31 // pred_check_branch
          %290 = sbr.rel (%p288) target = $region36
        $region35: #{tpu_custom_call.1} parent=31 // pred_region
          %s291 = sand.u32 %s35, 1
          %s292 = scalar_lea.sflag [#allocation3], %s291
          %s293 = sand.u32 %s35, 1
          %s294 = smul.addr %s293, 64
          %s295 = scalar_lea.vmem [#allocation2], %s294
          %297 = vsyncadd %s292, 0
          %s298 = smul.addr %s25, 16
          %s299 = smul.addr %s298, 4
          %s300 = scalar_lea.hbm %s0, %s299
          %s301 = sshll.u32 %s300, 4
          %s302 = int_to_ptr.hbm [resolvable:$true] %s301
          %s303 = sshll.u32 %s295, 4
          %s304 = int_to_ptr.vmem [resolvable:$true] %s303
          %309 = dma.hbm_to_vmem [thread:$0]  %s302, 1024, %s304, %s292, 128, 128, 8
        $region36: #{tpu_custom_call.1} parent=31 // pred_fallthru
          _
        // Predicated region
        $region37: #{tpu_custom_call.1} parent=31 // pred_check
          %p310 = pneg %p71
        $region38: #{tpu_custom_call.1} parent=31 // pred_check_branch
          %312 = sbr.rel (%p310) target = $region40
        $region39: #{tpu_custom_call.1} parent=31 // pred_region
          %s313 = sand.u32 %s25, 1
          %s314 = scalar_lea.sflag [#allocation6], %s313
          %s315 = sand.u32 %s61, 1
          %s316 = scalar_lea.vmem [#allocation5], %s315
          %318 = vsyncadd %s314, 0
          %s319 = scalar_lea.hbm %s1, %s25
          %s321 = sshll.u32 %s319, 4
          %s322 = int_to_ptr.hbm [resolvable:$true] %s321
          %s323 = sshll.u32 %s316, 4
          %s324 = int_to_ptr.vmem [resolvable:$true] %s323
          %326 = dma.hbm_to_vmem [thread:$0]  %s322, 16, %s324, %s314
        $region40: #{tpu_custom_call.1} parent=31 // pred_fallthru
          _
      $region32: #{tpu_custom_call.1} parent=5 // pred_fallthru
        _
      %p327 = scmp.le.s32.totalorder 1, %s25
      %p328 = scmp.lt.s32.totalorder %s25, 3
      %p329 = pnand %p327, %p328
      %p330 = pneg %p329
      // Predicated region
      $region41: #{tpu_custom_call.1} parent=5 // pred_check
        _
      $region42: #{tpu_custom_call.1} parent=5 // pred_check_branch
        %332 = sbr.rel (%p329) target = $region44
      $region43: #{tpu_custom_call.1} parent=5 // pred_region
        %s333 = ssub.s32 %s25, 1
        %s334 = sand.u32 %s38, 1
        %s335 = scalar_lea.sflag [#allocation3], %s334
        %s336 = sand.u32 %s38, 1
        %s337 = smul.addr %s336, 64
        %s338 = scalar_lea.vmem [#allocation2], %s337
        // Predicated region
        $region45: #{tpu_custom_call.1} parent=43 // pred_check
          %p339 = pneg %p51
        $region46: #{tpu_custom_call.1} parent=43 // pred_check_branch
          %341 = sbr.rel (%p339) target = $region48
        $region47: #{tpu_custom_call.1} parent=43 // pred_region
          %343 = dma.done %s335, 1024
        $region48: #{tpu_custom_call.1} parent=43 // pred_fallthru
          _
        %s344 = sand.u32 %s30, 1
        %s345 = scalar_lea.sflag [#allocation6], %s344
        %s346 = sand.u32 %s64, 1
        %s347 = scalar_lea.vmem [#allocation5], %s346
        // Predicated region
        $region49: #{tpu_custom_call.1} parent=43 // pred_check
          %p348 = pneg %p77
        $region50: #{tpu_custom_call.1} parent=43 // pred_check_branch
          %350 = sbr.rel (%p348) target = $region52
        $region51: #{tpu_custom_call.1} parent=43 // pred_region
          %352 = dma.done %s345, 16
        $region52: #{tpu_custom_call.1} parent=43 // pred_fallthru
          _
        // Predicated region
        $region53: #{tpu_custom_call.1} parent=43 // pred_check
          %p353 = pneg %p98
        $region54: #{tpu_custom_call.1} parent=43 // pred_check_branch
          %355 = sbr.rel (%p353) target = $region56
        $region55: #{tpu_custom_call.1} parent=43 // pred_region
          %357 = dma.done [#allocation6], 512
        $region56: #{tpu_custom_call.1} parent=43 // pred_fallthru
          _
        // Predicated region
        $region57: #{tpu_custom_call.1} parent=43 // pred_check
          %p358 = pneg %p119
        $region58: #{tpu_custom_call.1} parent=43 // pred_check_branch
          %360 = sbr.rel (%p358) target = $region60
        $region59: #{tpu_custom_call.1} parent=43 // pred_region
          %362 = dma.done [#allocation9], 1280
        $region60: #{tpu_custom_call.1} parent=43 // pred_fallthru
          _
        // Predicated region
        $region61: #{tpu_custom_call.1} parent=43 // pred_check
          %p363 = pneg %p140
        $region62: #{tpu_custom_call.1} parent=43 // pred_check_branch
          %365 = sbr.rel (%p363) target = $region64
        $region63: #{tpu_custom_call.1} parent=43 // pred_region
          %367 = dma.done [#allocation9], 4608
        $region64: #{tpu_custom_call.1} parent=43 // pred_fallthru
          _
        // Predicated region
        $region65: #{tpu_custom_call.1} parent=43 // pred_check
          %p368 = pneg %p161
        $region66: #{tpu_custom_call.1} parent=43 // pred_check_branch
          %370 = sbr.rel (%p368) target = $region68
        $region67: #{tpu_custom_call.1} parent=43 // pred_region
          %372 = dma.done [#allocation12], 8192
        $region68: #{tpu_custom_call.1} parent=43 // pred_fallthru
          _
        %s373 = sand.u32 %s38, 1
        %s374 = scalar_lea.sflag [#allocation3], %s373
        %s375 = sand.u32 %s38, 1
        %s376 = smul.addr %s375, 64
        %s377 = scalar_lea.vmem [#allocation2], %s376
        %p378 = pneg %p51
        %p379 = pneg %p48
        %s380 = sand.u32 %s30, 1
        %s381 = scalar_lea.sflag [#allocation6], %s380
        %s382 = sand.u32 %s64, 1
        %s383 = scalar_lea.vmem [#allocation5], %s382
        %p384 = pneg %p77
        %p385 = pneg %p74
        %p386 = pneg %p98
        %p387 = pneg %p95
        %p388 = pneg %p119
        %p389 = pneg %p116
        %p390 = pneg %p140
        %p391 = pneg %p137
        %p392 = pneg %p161
        %p393 = pneg %p158
        %p394 = pneg %p187
        %p395 = pneg %p184
        %p396 = scmp.lt.s32.totalorder %s30, 1
        %s397 = scalar_select %p396, %s30, 1
        %s398 = smul.addr %s397, 8
        %s399 = scalar_lea.vmem %s6, %s398
        %p400 = pneg %p213
        %p401 = pneg %p210
        %s402 = sand.u32 %s200, 1
        %s403 = scalar_lea.sflag [#allocation4], %s402
        %s404 = sand.u32 %s200, 1
        %s405 = smul.addr %s404, 8
        %s406 = scalar_lea.vmem [#allocation13], %s405
        %p407 = scmp.lt.s32.totalorder %s30, 1
        %s408 = scalar_select %p407, %s30, 1
        %s409 = smul.addr %s408, 8
        %s410 = scalar_lea.vmem %s6, %s409
        %v412 = vld [vmem:[%s338] sm:$0xff]
        %v413 = vld [vmem:[%s338 + $0x8] sm:$0xff]
        %v414 = vld [vmem:[%s338 + $0x10] sm:$0xff]
        %v415 = vld [vmem:[%s338 + $0x18] sm:$0xff]
        %v416 = vld [vmem:[%s338 + $0x20] sm:$0xff]
        %v417 = vld [vmem:[%s338 + $0x28] sm:$0xff]
        %v418 = vld [vmem:[%s338 + $0x30] sm:$0xff]
        %v419 = vld [vmem:[%s338 + $0x38] sm:$0xff]
        %v420 = vld [vmem:[#allocation11] sm:$0xff]
        %v421 = vld [vmem:[#allocation11 + $0x8] sm:$0xff]
        %v422 = vld [vmem:[#allocation11 + $0x10] sm:$0xff]
        %v423 = vld [vmem:[#allocation11 + $0x18] sm:$0xff]
        %v424 = vld [vmem:[#allocation11 + $0x20] sm:$0xff]
        %v425 = vld [vmem:[#allocation11 + $0x28] sm:$0xff]
        %v426 = vld [vmem:[#allocation11 + $0x30] sm:$0xff]
        %v427 = vld [vmem:[#allocation11 + $0x38] sm:$0xff]
        %v428 = vld [vmem:[#allocation11 + $0x40] sm:$0xff]
        %v429 = vld [vmem:[#allocation11 + $0x48] sm:$0xff]
        %v430 = vld [vmem:[#allocation11 + $0x50] sm:$0xff]
        %v431 = vld [vmem:[#allocation11 + $0x58] sm:$0xff]
        %v432 = vld [vmem:[#allocation11 + $0x60] sm:$0xff]
        %v433 = vld [vmem:[#allocation11 + $0x68] sm:$0xff]
        %v434 = vld [vmem:[#allocation11 + $0x70] sm:$0xff]
        %v435 = vld [vmem:[#allocation11 + $0x78] sm:$0xff]
        %v436 = vld [vmem:[#allocation11 + $0x80] sm:$0xff]
        %v437 = vld [vmem:[#allocation11 + $0x88] sm:$0xff]
        %v438 = vld [vmem:[#allocation11 + $0x90] sm:$0xff]
        %v439 = vld [vmem:[#allocation11 + $0x98] sm:$0xff]
        %v440 = vld [vmem:[#allocation11 + $0xa0] sm:$0xff]
        %v441 = vld [vmem:[#allocation11 + $0xa8] sm:$0xff]
        %v442 = vld [vmem:[#allocation11 + $0xb0] sm:$0xff]
        %v443 = vld [vmem:[#allocation11 + $0xb8] sm:$0xff]
        %v444 = vld [vmem:[#allocation11 + $0xc0] sm:$0xff]
        %v445 = vld [vmem:[#allocation11 + $0xc8] sm:$0xff]
        %v446 = vld [vmem:[#allocation11 + $0xd0] sm:$0xff]
        %v447 = vld [vmem:[#allocation11 + $0xd8] sm:$0xff]
        %v448 = vld [vmem:[#allocation11 + $0xe0] sm:$0xff]
        %v449 = vld [vmem:[#allocation11 + $0xe8] sm:$0xff]
        %v450 = vld [vmem:[#allocation11 + $0xf0] sm:$0xff]
        %v451 = vld [vmem:[#allocation11 + $0xf8] sm:$0xff]
        %v452 = vld [vmem:[#allocation11 + $0x100] sm:$0xff]
        %v453 = vld [vmem:[#allocation11 + $0x108] sm:$0xff]
        %v454 = vld [vmem:[#allocation11 + $0x110] sm:$0xff]
        %v455 = vld [vmem:[#allocation11 + $0x118] sm:$0xff]
        %v456 = vld [vmem:[#allocation11 + $0x120] sm:$0xff]
        %v457 = vld [vmem:[#allocation11 + $0x128] sm:$0xff]
        %v458 = vld [vmem:[#allocation11 + $0x130] sm:$0xff]
        %v459 = vld [vmem:[#allocation11 + $0x138] sm:$0xff]
        %v460 = vld [vmem:[#allocation11 + $0x140] sm:$0xff]
        %v461 = vld [vmem:[#allocation11 + $0x148] sm:$0xff]
        %v462 = vld [vmem:[#allocation11 + $0x150] sm:$0xff]
        %v463 = vld [vmem:[#allocation11 + $0x158] sm:$0xff]
        %v464 = vld [vmem:[#allocation11 + $0x160] sm:$0xff]
        %v465 = vld [vmem:[#allocation11 + $0x168] sm:$0xff]
        %v466 = vld [vmem:[#allocation11 + $0x170] sm:$0xff]
        %v467 = vld [vmem:[#allocation11 + $0x178] sm:$0xff]
        %v468 = vld [vmem:[#allocation11 + $0x180] sm:$0xff]
        %v469 = vld [vmem:[#allocation11 + $0x188] sm:$0xff]
        %v470 = vld [vmem:[#allocation11 + $0x190] sm:$0xff]
        %v471 = vld [vmem:[#allocation11 + $0x198] sm:$0xff]
        %v472 = vld [vmem:[#allocation11 + $0x1a0] sm:$0xff]
        %v473 = vld [vmem:[#allocation11 + $0x1a8] sm:$0xff]
        %v474 = vld [vmem:[#allocation11 + $0x1b0] sm:$0xff]
        %v475 = vld [vmem:[#allocation11 + $0x1b8] sm:$0xff]
        %v476 = vld [vmem:[#allocation11 + $0x1c0] sm:$0xff]
        %v477 = vld [vmem:[#allocation11 + $0x1c8] sm:$0xff]
        %v478 = vld [vmem:[#allocation11 + $0x1d0] sm:$0xff]
        %v479 = vld [vmem:[#allocation11 + $0x1d8] sm:$0xff]
        %v480 = vld [vmem:[#allocation11 + $0x1e0] sm:$0xff]
        %v481 = vld [vmem:[#allocation11 + $0x1e8] sm:$0xff]
        %v482 = vld [vmem:[#allocation11 + $0x1f0] sm:$0xff]
        %v483 = vld [vmem:[#allocation11 + $0x1f8] sm:$0xff]
        %v492 = vunpack.c.l.b16 %v412
        %v493 = vunpack.c.h.b16 %v412
        %v494 = vunpack.c.l.b16 %v413
        %v495 = vunpack.c.h.b16 %v413
        %v496 = vunpack.c.l.b16 %v414
        %v497 = vunpack.c.h.b16 %v414
        %v498 = vunpack.c.l.b16 %v415
        %v499 = vunpack.c.h.b16 %v415
        %v500 = vunpack.c.l.b16 %v416
        %v501 = vunpack.c.h.b16 %v416
        %v502 = vunpack.c.l.b16 %v417
        %v503 = vunpack.c.h.b16 %v417
        %v504 = vunpack.c.l.b16 %v418
        %v505 = vunpack.c.h.b16 %v418
        %v506 = vunpack.c.l.b16 %v419
        %v507 = vunpack.c.h.b16 %v419
        %v508 = vpack.c.b16 %v494, %v492
        %v509 = vpack.c.b16 %v495, %v493
        %v510 = vpack.c.b16 %v498, %v496
        %v511 = vpack.c.b16 %v499, %v497
        %v512 = vpack.c.b16 %v502, %v500
        %v513 = vpack.c.b16 %v503, %v501
        %v514 = vpack.c.b16 %v506, %v504
        %v515 = vpack.c.b16 %v507, %v505
        %v588 = vunpack.c.l.b16 %v420
        %v589 = vunpack.c.h.b16 %v420
        %v590 = vunpack.c.l.b16 %v421
        %v591 = vunpack.c.h.b16 %v421
        %v592 = vunpack.c.l.b16 %v422
        %v593 = vunpack.c.h.b16 %v422
        %v594 = vunpack.c.l.b16 %v423
        %v595 = vunpack.c.h.b16 %v423
        %v596 = vunpack.c.l.b16 %v424
        %v597 = vunpack.c.h.b16 %v424
        %v598 = vunpack.c.l.b16 %v425
        %v599 = vunpack.c.h.b16 %v425
        %v600 = vunpack.c.l.b16 %v426
        %v601 = vunpack.c.h.b16 %v426
        %v602 = vunpack.c.l.b16 %v427
        %v603 = vunpack.c.h.b16 %v427
        %v604 = vunpack.c.l.b16 %v428
        %v605 = vunpack.c.h.b16 %v428
        %v606 = vunpack.c.l.b16 %v429
        %v607 = vunpack.c.h.b16 %v429
        %v608 = vunpack.c.l.b16 %v430
        %v609 = vunpack.c.h.b16 %v430
        %v610 = vunpack.c.l.b16 %v431
        %v611 = vunpack.c.h.b16 %v431
        %v612 = vunpack.c.l.b16 %v432
        %v613 = vunpack.c.h.b16 %v432
        %v614 = vunpack.c.l.b16 %v433
        %v615 = vunpack.c.h.b16 %v433
        %v616 = vunpack.c.l.b16 %v434
        %v617 = vunpack.c.h.b16 %v434
        %v618 = vunpack.c.l.b16 %v435
        %v619 = vunpack.c.h.b16 %v435
        %v620 = vunpack.c.l.b16 %v436
        %v621 = vunpack.c.h.b16 %v436
        %v622 = vunpack.c.l.b16 %v437
        %v623 = vunpack.c.h.b16 %v437
        %v624 = vunpack.c.l.b16 %v438
        %v625 = vunpack.c.h.b16 %v438
        %v626 = vunpack.c.l.b16 %v439
        %v627 = vunpack.c.h.b16 %v439
        %v628 = vunpack.c.l.b16 %v440
        %v629 = vunpack.c.h.b16 %v440
        %v630 = vunpack.c.l.b16 %v441
        %v631 = vunpack.c.h.b16 %v441
        %v632 = vunpack.c.l.b16 %v442
        %v633 = vunpack.c.h.b16 %v442
        %v634 = vunpack.c.l.b16 %v443
        %v635 = vunpack.c.h.b16 %v443
        %v636 = vunpack.c.l.b16 %v444
        %v637 = vunpack.c.h.b16 %v444
        %v638 = vunpack.c.l.b16 %v445
        %v639 = vunpack.c.h.b16 %v445
        %v640 = vunpack.c.l.b16 %v446
        %v641 = vunpack.c.h.b16 %v446
        %v642 = vunpack.c.l.b16 %v447
        %v643 = vunpack.c.h.b16 %v447
        %v644 = vunpack.c.l.b16 %v448
        %v645 = vunpack.c.h.b16 %v448
        %v646 = vunpack.c.l.b16 %v449
        %v647 = vunpack.c.h.b16 %v449
        %v648 = vunpack.c.l.b16 %v450
        %v649 = vunpack.c.h.b16 %v450
        %v650 = vunpack.c.l.b16 %v451
        %v651 = vunpack.c.h.b16 %v451
        %v652 = vunpack.c.l.b16 %v452
        %v653 = vunpack.c.h.b16 %v452
        %v654 = vunpack.c.l.b16 %v453
        %v655 = vunpack.c.h.b16 %v453
        %v656 = vunpack.c.l.b16 %v454
        %v657 = vunpack.c.h.b16 %v454
        %v658 = vunpack.c.l.b16 %v455
        %v659 = vunpack.c.h.b16 %v455
        %v660 = vunpack.c.l.b16 %v456
        %v661 = vunpack.c.h.b16 %v456
        %v662 = vunpack.c.l.b16 %v457
        %v663 = vunpack.c.h.b16 %v457
        %v664 = vunpack.c.l.b16 %v458
        %v665 = vunpack.c.h.b16 %v458
        %v666 = vunpack.c.l.b16 %v459
        %v667 = vunpack.c.h.b16 %v459
        %v668 = vunpack.c.l.b16 %v460
        %v669 = vunpack.c.h.b16 %v460
        %v670 = vunpack.c.l.b16 %v461
        %v671 = vunpack.c.h.b16 %v461
        %v672 = vunpack.c.l.b16 %v462
        %v673 = vunpack.c.h.b16 %v462
        %v674 = vunpack.c.l.b16 %v463
        %v675 = vunpack.c.h.b16 %v463
        %v676 = vunpack.c.l.b16 %v464
        %v677 = vunpack.c.h.b16 %v464
        %v678 = vunpack.c.l.b16 %v465
        %v679 = vunpack.c.h.b16 %v465
        %v680 = vunpack.c.l.b16 %v466
        %v681 = vunpack.c.h.b16 %v466
        %v682 = vunpack.c.l.b16 %v467
        %v683 = vunpack.c.h.b16 %v467
        %v684 = vunpack.c.l.b16 %v468
        %v685 = vunpack.c.h.b16 %v468
        %v686 = vunpack.c.l.b16 %v469
        %v687 = vunpack.c.h.b16 %v469
        %v688 = vunpack.c.l.b16 %v470
        %v689 = vunpack.c.h.b16 %v470
        %v690 = vunpack.c.l.b16 %v471
        %v691 = vunpack.c.h.b16 %v471
        %v692 = vunpack.c.l.b16 %v472
        %v693 = vunpack.c.h.b16 %v472
        %v694 = vunpack.c.l.b16 %v473
        %v695 = vunpack.c.h.b16 %v473
        %v696 = vunpack.c.l.b16 %v474
        %v697 = vunpack.c.h.b16 %v474
        %v698 = vunpack.c.l.b16 %v475
        %v699 = vunpack.c.h.b16 %v475
        %v700 = vunpack.c.l.b16 %v476
        %v701 = vunpack.c.h.b16 %v476
        %v702 = vunpack.c.l.b16 %v477
        %v703 = vunpack.c.h.b16 %v477
        %v704 = vunpack.c.l.b16 %v478
        %v705 = vunpack.c.h.b16 %v478
        %v706 = vunpack.c.l.b16 %v479
        %v707 = vunpack.c.h.b16 %v479
        %v708 = vunpack.c.l.b16 %v480
        %v709 = vunpack.c.h.b16 %v480
        %v710 = vunpack.c.l.b16 %v481
        %v711 = vunpack.c.h.b16 %v481
        %v712 = vunpack.c.l.b16 %v482
        %v713 = vunpack.c.h.b16 %v482
        %v714 = vunpack.c.l.b16 %v483
        %v715 = vunpack.c.h.b16 %v483
        %v716 = vpack.c.b16 %v592, %v588
        %v717 = vpack.c.b16 %v593, %v589
        %v718 = vpack.c.b16 %v594, %v590
        %v719 = vpack.c.b16 %v595, %v591
        %v720 = vpack.c.b16 %v600, %v596
        %v721 = vpack.c.b16 %v601, %v597
        %v722 = vpack.c.b16 %v602, %v598
        %v723 = vpack.c.b16 %v603, %v599
        %v724 = vpack.c.b16 %v608, %v604
        %v725 = vpack.c.b16 %v609, %v605
        %v726 = vpack.c.b16 %v610, %v606
        %v727 = vpack.c.b16 %v611, %v607
        %v728 = vpack.c.b16 %v616, %v612
        %v729 = vpack.c.b16 %v617, %v613
        %v730 = vpack.c.b16 %v618, %v614
        %v731 = vpack.c.b16 %v619, %v615
        %v732 = vpack.c.b16 %v624, %v620
        %v733 = vpack.c.b16 %v625, %v621
        %v734 = vpack.c.b16 %v626, %v622
        %v735 = vpack.c.b16 %v627, %v623
        %v736 = vpack.c.b16 %v632, %v628
        %v737 = vpack.c.b16 %v633, %v629
        %v738 = vpack.c.b16 %v634, %v630
        %v739 = vpack.c.b16 %v635, %v631
        %v740 = vpack.c.b16 %v640, %v636
        %v741 = vpack.c.b16 %v641, %v637
        %v742 = vpack.c.b16 %v642, %v638
        %v743 = vpack.c.b16 %v643, %v639
        %v744 = vpack.c.b16 %v648, %v644
        %v745 = vpack.c.b16 %v649, %v645
        %v746 = vpack.c.b16 %v650, %v646
        %v747 = vpack.c.b16 %v651, %v647
        %v748 = vpack.c.b16 %v656, %v652
        %v749 = vpack.c.b16 %v657, %v653
        %v750 = vpack.c.b16 %v658, %v654
        %v751 = vpack.c.b16 %v659, %v655
        %v752 = vpack.c.b16 %v664, %v660
        %v753 = vpack.c.b16 %v665, %v661
        %v754 = vpack.c.b16 %v666, %v662
        %v755 = vpack.c.b16 %v667, %v663
        %v756 = vpack.c.b16 %v672, %v668
        %v757 = vpack.c.b16 %v673, %v669
        %v758 = vpack.c.b16 %v674, %v670
        %v759 = vpack.c.b16 %v675, %v671
        %v760 = vpack.c.b16 %v680, %v676
        %v761 = vpack.c.b16 %v681, %v677
        %v762 = vpack.c.b16 %v682, %v678
        %v763 = vpack.c.b16 %v683, %v679
        %v764 = vpack.c.b16 %v688, %v684
        %v765 = vpack.c.b16 %v689, %v685
        %v766 = vpack.c.b16 %v690, %v686
        %v767 = vpack.c.b16 %v691, %v687
        %v768 = vpack.c.b16 %v696, %v692
        %v769 = vpack.c.b16 %v697, %v693
        %v770 = vpack.c.b16 %v698, %v694
        %v771 = vpack.c.b16 %v699, %v695
        %v772 = vpack.c.b16 %v704, %v700
        %v773 = vpack.c.b16 %v705, %v701
        %v774 = vpack.c.b16 %v706, %v702
        %v775 = vpack.c.b16 %v707, %v703
        %v776 = vpack.c.b16 %v712, %v708
        %v777 = vpack.c.b16 %v713, %v709
        %v778 = vpack.c.b16 %v714, %v710
        %v779 = vpack.c.b16 %v715, %v711
        %844 = vmatpush.bf16.msra.mxu0 %v744
        %845 = vmatpush.bf16.msra.mxu0 %v740
        %846 = vmatpush.bf16.msra.mxu0 %v736
        %847 = vmatpush.bf16.msra.mxu0 %v732
        %848 = vmatpush.bf16.msra.mxu0 %v728
        %849 = vmatpush.bf16.msra.mxu0 %v724
        %850 = vmatpush.bf16.msra.mxu0 %v720
        %851 = vmatpush.bf16.msra.mxu0 %v716
        %852 = vmatmul.bf16.gmra.mxu0 %v508
        %v853 = vpop.f32.mrf.mxu0
        %v854 = vadd.f32 0.0, %v853
        %v855 = vpop.f32.mrf.mxu0
        %v856 = vadd.f32 0.0, %v855
        %857 = vmatmul.bf16.gmra.mxu0 %v510
        %v858 = vpop.f32.mrf.mxu0
        %v859 = vadd.f32 0.0, %v858
        %v860 = vpop.f32.mrf.mxu0
        %v861 = vadd.f32 0.0, %v860
        %862 = vmatmul.bf16.gmra.mxu0 %v512
        %v863 = vpop.f32.mrf.mxu0
        %v864 = vadd.f32 0.0, %v863
        %v865 = vpop.f32.mrf.mxu0
        %v866 = vadd.f32 0.0, %v865
        %867 = vmatmul.bf16.gmra.mxu0 %v514
        %v868 = vpop.f32.mrf.mxu0
        %v869 = vadd.f32 0.0, %v868
        %v870 = vpop.f32.mrf.mxu0
        %v871 = vadd.f32 0.0, %v870
        %872 = vdwg.mxu0
        %873 = vmatpush.bf16.msra.mxu0 %v776
        %874 = vmatpush.bf16.msra.mxu0 %v772
        %875 = vmatpush.bf16.msra.mxu0 %v768
        %876 = vmatpush.bf16.msra.mxu0 %v764
        %877 = vmatpush.bf16.msra.mxu0 %v760
        %878 = vmatpush.bf16.msra.mxu0 %v756
        %879 = vmatpush.bf16.msra.mxu0 %v752
        %880 = vmatpush.bf16.msra.mxu0 %v748
        %881 = vmatmul.bf16.gmra.mxu0 %v509
        %v882 = vpop.f32.mrf.mxu0
        %v883 = vadd.f32 %v854, %v882
        %v884 = vpop.f32.mrf.mxu0
        %v885 = vadd.f32 %v856, %v884
        %886 = vmatmul.bf16.gmra.mxu0 %v511
        %v887 = vpop.f32.mrf.mxu0
        %v888 = vadd.f32 %v859, %v887
        %v889 = vpop.f32.mrf.mxu0
        %v890 = vadd.f32 %v861, %v889
        %891 = vmatmul.bf16.gmra.mxu0 %v513
        %v892 = vpop.f32.mrf.mxu0
        %v893 = vadd.f32 %v864, %v892
        %v894 = vpop.f32.mrf.mxu0
        %v895 = vadd.f32 %v866, %v894
        %896 = vmatmul.bf16.gmra.mxu0 %v515
        %v897 = vpop.f32.mrf.mxu0
        %v898 = vadd.f32 %v869, %v897
        %v899 = vpop.f32.mrf.mxu0
        %v900 = vadd.f32 %v871, %v899
        %901 = vdwg.mxu0
        %902 = vmatpush.bf16.msra.mxu0 %v745
        %903 = vmatpush.bf16.msra.mxu0 %v741
        %904 = vmatpush.bf16.msra.mxu0 %v737
        %905 = vmatpush.bf16.msra.mxu0 %v733
        %906 = vmatpush.bf16.msra.mxu0 %v729
        %907 = vmatpush.bf16.msra.mxu0 %v725
        %908 = vmatpush.bf16.msra.mxu0 %v721
        %909 = vmatpush.bf16.msra.mxu0 %v717
        %910 = vmatmul.bf16.gmra.mxu0 %v508
        %v911 = vpop.f32.mrf.mxu0
        %v912 = vadd.f32 0.0, %v911
        %v913 = vpop.f32.mrf.mxu0
        %v914 = vadd.f32 0.0, %v913
        %915 = vmatmul.bf16.gmra.mxu0 %v510
        %v916 = vpop.f32.mrf.mxu0
        %v917 = vadd.f32 0.0, %v916
        %v918 = vpop.f32.mrf.mxu0
        %v919 = vadd.f32 0.0, %v918
        %920 = vmatmul.bf16.gmra.mxu0 %v512
        %v921 = vpop.f32.mrf.mxu0
        %v922 = vadd.f32 0.0, %v921
        %v923 = vpop.f32.mrf.mxu0
        %v924 = vadd.f32 0.0, %v923
        %925 = vmatmul.bf16.gmra.mxu0 %v514
        %v926 = vpop.f32.mrf.mxu0
        %v927 = vadd.f32 0.0, %v926
        %v928 = vpop.f32.mrf.mxu0
        %v929 = vadd.f32 0.0, %v928
        %930 = vdwg.mxu0
        %931 = vmatpush.bf16.msra.mxu0 %v777
        %932 = vmatpush.bf16.msra.mxu0 %v773
        %933 = vmatpush.bf16.msra.mxu0 %v769
        %934 = vmatpush.bf16.msra.mxu0 %v765
        %935 = vmatpush.bf16.msra.mxu0 %v761
        %936 = vmatpush.bf16.msra.mxu0 %v757
        %937 = vmatpush.bf16.msra.mxu0 %v753
        %938 = vmatpush.bf16.msra.mxu0 %v749
        %939 = vmatmul.bf16.gmra.mxu0 %v509
        %v940 = vpop.f32.mrf.mxu0
        %v941 = vadd.f32 %v912, %v940
        %v942 = vpop.f32.mrf.mxu0
        %v943 = vadd.f32 %v914, %v942
        %944 = vmatmul.bf16.gmra.mxu0 %v511
        %v945 = vpop.f32.mrf.mxu0
        %v946 = vadd.f32 %v917, %v945
        %v947 = vpop.f32.mrf.mxu0
        %v948 = vadd.f32 %v919, %v947
        %949 = vmatmul.bf16.gmra.mxu0 %v513
        %v950 = vpop.f32.mrf.mxu0
        %v951 = vadd.f32 %v922, %v950
        %v952 = vpop.f32.mrf.mxu0
        %v953 = vadd.f32 %v924, %v952
        %954 = vmatmul.bf16.gmra.mxu0 %v515
        %v955 = vpop.f32.mrf.mxu0
        %v956 = vadd.f32 %v927, %v955
        %v957 = vpop.f32.mrf.mxu0
        %v958 = vadd.f32 %v929, %v957
        %959 = vdwg.mxu0
        %960 = vmatpush.bf16.msra.mxu0 %v746
        %961 = vmatpush.bf16.msra.mxu0 %v742
        %962 = vmatpush.bf16.msra.mxu0 %v738
        %963 = vmatpush.bf16.msra.mxu0 %v734
        %964 = vmatpush.bf16.msra.mxu0 %v730
        %965 = vmatpush.bf16.msra.mxu0 %v726
        %966 = vmatpush.bf16.msra.mxu0 %v722
        %967 = vmatpush.bf16.msra.mxu0 %v718
        %968 = vmatmul.bf16.gmra.mxu0 %v508
        %v969 = vpop.f32.mrf.mxu0
        %v970 = vadd.f32 0.0, %v969
        %v971 = vpop.f32.mrf.mxu0
        %v972 = vadd.f32 0.0, %v971
        %973 = vmatmul.bf16.gmra.mxu0 %v510
        %v974 = vpop.f32.mrf.mxu0
        %v975 = vadd.f32 0.0, %v974
        %v976 = vpop.f32.mrf.mxu0
        %v977 = vadd.f32 0.0, %v976
        %978 = vmatmul.bf16.gmra.mxu0 %v512
        %v979 = vpop.f32.mrf.mxu0
        %v980 = vadd.f32 0.0, %v979
        %v981 = vpop.f32.mrf.mxu0
        %v982 = vadd.f32 0.0, %v981
        %983 = vmatmul.bf16.gmra.mxu0 %v514
        %v984 = vpop.f32.mrf.mxu0
        %v985 = vadd.f32 0.0, %v984
        %v986 = vpop.f32.mrf.mxu0
        %v987 = vadd.f32 0.0, %v986
        %988 = vdwg.mxu0
        %989 = vmatpush.bf16.msra.mxu0 %v778
        %990 = vmatpush.bf16.msra.mxu0 %v774
        %991 = vmatpush.bf16.msra.mxu0 %v770
        %992 = vmatpush.bf16.msra.mxu0 %v766
        %993 = vmatpush.bf16.msra.mxu0 %v762
        %994 = vmatpush.bf16.msra.mxu0 %v758
        %995 = vmatpush.bf16.msra.mxu0 %v754
        %996 = vmatpush.bf16.msra.mxu0 %v750
        %997 = vmatmul.bf16.gmra.mxu0 %v509
        %v998 = vpop.f32.mrf.mxu0
        %v999 = vadd.f32 %v970, %v998
        %v1000 = vpop.f32.mrf.mxu0
        %v1001 = vadd.f32 %v972, %v1000
        %1002 = vmatmul.bf16.gmra.mxu0 %v511
        %v1003 = vpop.f32.mrf.mxu0
        %v1004 = vadd.f32 %v975, %v1003
        %v1005 = vpop.f32.mrf.mxu0
        %v1006 = vadd.f32 %v977, %v1005
        %1007 = vmatmul.bf16.gmra.mxu0 %v513
        %v1008 = vpop.f32.mrf.mxu0
        %v1009 = vadd.f32 %v980, %v1008
        %v1010 = vpop.f32.mrf.mxu0
        %v1011 = vadd.f32 %v982, %v1010
        %1012 = vmatmul.bf16.gmra.mxu0 %v515
        %v1013 = vpop.f32.mrf.mxu0
        %v1014 = vadd.f32 %v985, %v1013
        %v1015 = vpop.f32.mrf.mxu0
        %v1016 = vadd.f32 %v987, %v1015
        %1017 = vdwg.mxu0
        %1018 = vmatpush.bf16.msra.mxu0 %v747
        %1019 = vmatpush.bf16.msra.mxu0 %v743
        %1020 = vmatpush.bf16.msra.mxu0 %v739
        %1021 = vmatpush.bf16.msra.mxu0 %v735
        %1022 = vmatpush.bf16.msra.mxu0 %v731
        %1023 = vmatpush.bf16.msra.mxu0 %v727
        %1024 = vmatpush.bf16.msra.mxu0 %v723
        %1025 = vmatpush.bf16.msra.mxu0 %v719
        %1026 = vmatmul.bf16.gmra.mxu0 %v508
        %v1027 = vpop.f32.mrf.mxu0
        %v1028 = vadd.f32 0.0, %v1027
        %v1029 = vpop.f32.mrf.mxu0
        %v1030 = vadd.f32 0.0, %v1029
        %1031 = vmatmul.bf16.gmra.mxu0 %v510
        %v1032 = vpop.f32.mrf.mxu0
        %v1033 = vadd.f32 0.0, %v1032
        %v1034 = vpop.f32.mrf.mxu0
        %v1035 = vadd.f32 0.0, %v1034
        %1036 = vmatmul.bf16.gmra.mxu0 %v512
        %v1037 = vpop.f32.mrf.mxu0
        %v1038 = vadd.f32 0.0, %v1037
        %v1039 = vpop.f32.mrf.mxu0
        %v1040 = vadd.f32 0.0, %v1039
        %1041 = vmatmul.bf16.gmra.mxu0 %v514
        %v1042 = vpop.f32.mrf.mxu0
        %v1043 = vadd.f32 0.0, %v1042
        %v1044 = vpop.f32.mrf.mxu0
        %v1045 = vadd.f32 0.0, %v1044
        %1046 = vdwg.mxu0
        %1047 = vmatpush.bf16.msra.mxu0 %v779
        %1048 = vmatpush.bf16.msra.mxu0 %v775
        %1049 = vmatpush.bf16.msra.mxu0 %v771
        %1050 = vmatpush.bf16.msra.mxu0 %v767
        %1051 = vmatpush.bf16.msra.mxu0 %v763
        %1052 = vmatpush.bf16.msra.mxu0 %v759
        %1053 = vmatpush.bf16.msra.mxu0 %v755
        %1054 = vmatpush.bf16.msra.mxu0 %v751
        %1055 = vmatmul.bf16.gmra.mxu0 %v509
        %v1056 = vpop.f32.mrf.mxu0
        %v1057 = vadd.f32 %v1028, %v1056
        %v1058 = vpop.f32.mrf.mxu0
        %v1059 = vadd.f32 %v1030, %v1058
        %1060 = vmatmul.bf16.gmra.mxu0 %v511
        %v1061 = vpop.f32.mrf.mxu0
        %v1062 = vadd.f32 %v1033, %v1061
        %v1063 = vpop.f32.mrf.mxu0
        %v1064 = vadd.f32 %v1035, %v1063
        %1065 = vmatmul.bf16.gmra.mxu0 %v513
        %v1066 = vpop.f32.mrf.mxu0
        %v1067 = vadd.f32 %v1038, %v1066
        %v1068 = vpop.f32.mrf.mxu0
        %v1069 = vadd.f32 %v1040, %v1068
        %1070 = vmatmul.bf16.gmra.mxu0 %v515
        %v1071 = vpop.f32.mrf.mxu0
        %v1072 = vadd.f32 %v1043, %v1071
        %v1073 = vpop.f32.mrf.mxu0
        %v1074 = vadd.f32 %v1045, %v1073
        %1075 = vdwg.mxu0
        %s1076 = scalar_lea.vmem [#allocation8], 64
        %v1077 = vld [vmem:[%s1076] ss:$8 sm:$0x3]
        %s1078 = scalar_lea.vmem [#allocation8], 65
        %v1079 = vld [vmem:[%s1078] ss:$8 sm:$0x3]
        %v1081 = vperm.slane %v1077, 0
        %v1082 = vperm.slane %v1077, 1
        %v1085 = vadd.f32 %v883, %v1081
        %v1086 = vadd.f32 %v941, %v1082
        %v1087 = vadd.f32 %v885, %v1081
        %v1088 = vadd.f32 %v943, %v1082
        %v1089 = vadd.f32 %v888, %v1081
        %v1090 = vadd.f32 %v946, %v1082
        %v1091 = vadd.f32 %v890, %v1081
        %v1092 = vadd.f32 %v948, %v1082
        %v1093 = vadd.f32 %v893, %v1081
        %v1094 = vadd.f32 %v951, %v1082
        %v1095 = vadd.f32 %v895, %v1081
        %v1096 = vadd.f32 %v953, %v1082
        %v1097 = vadd.f32 %v898, %v1081
        %v1098 = vadd.f32 %v956, %v1082
        %v1099 = vadd.f32 %v900, %v1081
        %v1100 = vadd.f32 %v958, %v1082
        %v1101 = vpack.c.bf16 %v1087, %v1085
        %v1102 = vpack.c.bf16 %v1088, %v1086
        %v1103 = vpack.c.bf16 %v1091, %v1089
        %v1104 = vpack.c.bf16 %v1092, %v1090
        %v1105 = vpack.c.bf16 %v1095, %v1093
        %v1106 = vpack.c.bf16 %v1096, %v1094
        %v1107 = vpack.c.bf16 %v1099, %v1097
        %v1108 = vpack.c.bf16 %v1100, %v1098
        %v1110 = vperm.slane %v1079, 0
        %v1111 = vperm.slane %v1079, 1
        %v1114 = vadd.f32 %v999, %v1110
        %v1115 = vadd.f32 %v1057, %v1111
        %v1116 = vadd.f32 %v1001, %v1110
        %v1117 = vadd.f32 %v1059, %v1111
        %v1118 = vadd.f32 %v1004, %v1110
        %v1119 = vadd.f32 %v1062, %v1111
        %v1120 = vadd.f32 %v1006, %v1110
        %v1121 = vadd.f32 %v1064, %v1111
        %v1122 = vadd.f32 %v1009, %v1110
        %v1123 = vadd.f32 %v1067, %v1111
        %v1124 = vadd.f32 %v1011, %v1110
        %v1125 = vadd.f32 %v1069, %v1111
        %v1126 = vadd.f32 %v1014, %v1110
        %v1127 = vadd.f32 %v1072, %v1111
        %v1128 = vadd.f32 %v1016, %v1110
        %v1129 = vadd.f32 %v1074, %v1111
        %v1130 = vld [vmem:[#allocation10 + $0x100] sm:$0xff]
        %v1131 = vld [vmem:[#allocation10 + $0x108] sm:$0xff]
        %v1132 = vld [vmem:[#allocation10 + $0x110] sm:$0xff]
        %v1133 = vld [vmem:[#allocation10 + $0x118] sm:$0xff]
        %v1134 = vld [vmem:[#allocation8] sm:$0xff]
        %v1135 = vld [vmem:[#allocation8 + $0x8] sm:$0xff]
        %v1136 = vld [vmem:[#allocation8 + $0x10] sm:$0xff]
        %v1137 = vld [vmem:[#allocation8 + $0x18] sm:$0xff]
        %v1138 = vld [vmem:[#allocation8 + $0x20] sm:$0xff]
        %v1139 = vld [vmem:[#allocation8 + $0x28] sm:$0xff]
        %v1140 = vld [vmem:[#allocation8 + $0x30] sm:$0xff]
        %v1141 = vld [vmem:[#allocation8 + $0x38] sm:$0xff]
        %v1142 = vld [vmem:[#allocation7] sm:$0xff]
        %v1143 = vld [vmem:[#allocation7 + $0x8] sm:$0xff]
        %v1144 = vld [vmem:[#allocation7 + $0x10] sm:$0xff]
        %v1145 = vld [vmem:[#allocation7 + $0x18] sm:$0xff]
        %v1150 = vunpack.c.l.b16 %v1130
        %v1151 = vunpack.c.h.b16 %v1130
        %v1152 = vunpack.c.l.b16 %v1131
        %v1153 = vunpack.c.h.b16 %v1131
        %v1154 = vunpack.c.l.b16 %v1132
        %v1155 = vunpack.c.h.b16 %v1132
        %v1156 = vunpack.c.l.b16 %v1133
        %v1157 = vunpack.c.h.b16 %v1133
        %v1158 = vpack.c.b16 %v1152, %v1150
        %v1159 = vpack.c.b16 %v1153, %v1151
        %v1160 = vpack.c.b16 %v1156, %v1154
        %v1161 = vpack.c.b16 %v1157, %v1155
        %1166 = vmatpush.bf16.xpose.msra.mxu0 0
        %1167 = vmatpush.bf16.xpose.msra.mxu0 0
        %1168 = vmatpush.bf16.xpose.msra.mxu0 0
        %1169 = vmatpush.bf16.xpose.msra.mxu0 0
        %1170 = vmatpush.bf16.xpose.msra.mxu0 %v1107
        %1171 = vmatpush.bf16.xpose.msra.mxu0 %v1105
        %1172 = vmatpush.bf16.xpose.msra.mxu0 %v1103
        %1173 = vmatpush.bf16.xpose.msra.mxu0 %v1101
        %1174 = vmatmul.bf16.gmra.mxu0 %v1158
        %v1175 = vpop.f32.mrf.mxu0
        %v1176 = vadd.f32 %v1142, %v1175
        %v1177 = vpop.f32.mrf.mxu0
        %v1178 = vadd.f32 %v1143, %v1177
        %1179 = vmatmul.bf16.gmra.mxu0 %v1160
        %v1180 = vpop.f32.mrf.mxu0
        %v1181 = vadd.f32 %v1144, %v1180
        %v1182 = vpop.f32.mrf.mxu0
        %v1183 = vadd.f32 %v1145, %v1182
        %1184 = vdwg.mxu0
        %1185 = vmatpush.bf16.xpose.msra.mxu0 0
        %1186 = vmatpush.bf16.xpose.msra.mxu0 0
        %1187 = vmatpush.bf16.xpose.msra.mxu0 0
        %1188 = vmatpush.bf16.xpose.msra.mxu0 0
        %1189 = vmatpush.bf16.xpose.msra.mxu0 %v1108
        %1190 = vmatpush.bf16.xpose.msra.mxu0 %v1106
        %1191 = vmatpush.bf16.xpose.msra.mxu0 %v1104
        %1192 = vmatpush.bf16.xpose.msra.mxu0 %v1102
        %1193 = vmatmul.bf16.gmra.mxu0 %v1159
        %v1194 = vpop.f32.mrf.mxu0
        %v1195 = vadd.f32 %v1176, %v1194
        %v1196 = vpop.f32.mrf.mxu0
        %v1197 = vadd.f32 %v1178, %v1196
        %1198 = vmatmul.bf16.gmra.mxu0 %v1161
        %v1199 = vpop.f32.mrf.mxu0
        %v1200 = vadd.f32 %v1181, %v1199
        %v1201 = vpop.f32.mrf.mxu0
        %v1202 = vadd.f32 %v1183, %v1201
        %1203 = vdwg.mxu0
        %v1204 = vld [vmem:[%s347] sm:$0x1]
        %v1206 = vperm.slane %v1204, 0
        %v1208 = vadd.f32 %v1195, %v1206
        %v1209 = vadd.f32 %v1197, %v1206
        %v1210 = vadd.f32 %v1200, %v1206
        %v1211 = vadd.f32 %v1202, %v1206
        %vm1212 = vcmask 523264
        %v1213 = vsel %vm1212, %v1208, -inf
        %1214 = vmax.xlane.f32.xlu0 %v1213
        %v1215 = vpop.xlane.xlu0 %1214
        %v1216 = vsel %vm1212, %v1209, -inf
        %1217 = vmax.xlane.f32.xlu0 %v1216
        %v1218 = vpop.xlane.xlu0 %1217
        %v1219 = vsel %vm1212, %v1210, -inf
        %1220 = vmax.xlane.f32.xlu0 %v1219
        %v1221 = vpop.xlane.xlu0 %1220
        %v1222 = vsel %vm1212, %v1211, -inf
        %1223 = vmax.xlane.f32.xlu0 %v1222
        %v1224 = vpop.xlane.xlu0 %1223
        %v1225 = vsub.f32 %v1208, %v1215
        %v1226 = vsub.f32 %v1209, %v1218
        %v1227 = vsub.f32 %v1210, %v1221
        %v1228 = vsub.f32 %v1211, %v1224
        %v1229 = vmul.f32 %v1225, 1.442695
        %v1230 = vpow.pop %v1229
        %v1231 = vmul.f32 %v1226, 1.442695
        %v1232 = vpow.pop %v1231
        %v1233 = vmul.f32 %v1227, 1.442695
        %v1234 = vpow.pop %v1233
        %v1235 = vmul.f32 %v1228, 1.442695
        %v1236 = vpow.pop %v1235
        %v1237 = vsel %vm1212, %v1230, 0.0
        %1238 = vadd.xlane.f32.xlu0 %v1237
        %v1239 = vpop.xlane.xlu0 %1238
        %v1240 = vsel %vm1212, %v1232, 0.0
        %1241 = vadd.xlane.f32.xlu0 %v1240
        %v1242 = vpop.xlane.xlu0 %1241
        %v1243 = vsel %vm1212, %v1234, 0.0
        %1244 = vadd.xlane.f32.xlu0 %v1243
        %v1245 = vpop.xlane.xlu0 %1244
        %v1246 = vsel %vm1212, %v1236, 0.0
        %1247 = vadd.xlane.f32.xlu0 %v1246
        %v1248 = vpop.xlane.xlu0 %1247
        %v1249 = vrcp.pop %v1239
        %v1250 = vrcp.pop %v1242
        %v1251 = vrcp.pop %v1245
        %v1252 = vrcp.pop %v1248
        %v1253 = vmul.f32 %v1230, %v1249
        %v1254 = vmul.f32 %v1232, %v1250
        %v1255 = vmul.f32 %v1234, %v1251
        %v1256 = vmul.f32 %v1236, %v1252
        %v1257 = vadd.f32 %v1253, %v1254
        %v1258 = vadd.f32 %v1257, %v1255
        %v1259 = vadd.f32 %v1258, %v1256
        %v1260 = vmul.f32 %v1259, 0.25
        %v1262 = vsel %vm1212, %v1253, 0
        %v1265 = vsel %vm1212, %v1254, 0
        %v1268 = vsel %vm1212, %v1255, 0
        %v1271 = vsel %vm1212, %v1256, 0
        %1273 = vmatpush.msra.mxu0 0.0
        %1274 = vmatpush.msra.mxu0 0.0
        %1275 = vmatpush.msra.mxu0 0.0
        %1276 = vmatpush.msra.mxu0 0.0
        %1277 = vmatpush.msra.mxu0 0.0
        %1278 = vmatpush.msra.mxu0 0.0
        %1279 = vmatpush.msra.mxu0 0.0
        %1280 = vmatpush.msra.mxu0 0.0
        %1281 = vmatpush.msra.mxu0 %v1128
        %1282 = vmatpush.msra.mxu0 %v1126
        %1283 = vmatpush.msra.mxu0 %v1124
        %1284 = vmatpush.msra.mxu0 %v1122
        %1285 = vmatpush.msra.mxu0 %v1120
        %1286 = vmatpush.msra.mxu0 %v1118
        %1287 = vmatpush.msra.mxu0 %v1116
        %1288 = vmatpush.msra.mxu0 %v1114
        %1289 = vmatmul.f32.gmra.mxu0 %v1262
        %v1290 = vpop.f32.mrf.mxu0
        %v1291 = vadd.f32 0.0, %v1290
        %1292 = vmatmul.f32.gmra.mxu0 %v1265
        %v1293 = vpop.f32.mrf.mxu0
        %v1294 = vadd.f32 0.0, %v1293
        %1295 = vmatmul.f32.gmra.mxu0 %v1268
        %v1296 = vpop.f32.mrf.mxu0
        %v1297 = vadd.f32 0.0, %v1296
        %1298 = vmatmul.f32.gmra.mxu0 %v1271
        %v1299 = vpop.f32.mrf.mxu0
        %v1300 = vadd.f32 0.0, %v1299
        %1301 = vdwg.mxu0
        %1302 = vmatpush.msra.mxu0 0.0
        %1303 = vmatpush.msra.mxu0 0.0
        %1304 = vmatpush.msra.mxu0 0.0
        %1305 = vmatpush.msra.mxu0 0.0
        %1306 = vmatpush.msra.mxu0 0.0
        %1307 = vmatpush.msra.mxu0 0.0
        %1308 = vmatpush.msra.mxu0 0.0
        %1309 = vmatpush.msra.mxu0 0.0
        %1310 = vmatpush.msra.mxu0 %v1129
        %1311 = vmatpush.msra.mxu0 %v1127
        %1312 = vmatpush.msra.mxu0 %v1125
        %1313 = vmatpush.msra.mxu0 %v1123
        %1314 = vmatpush.msra.mxu0 %v1121
        %1315 = vmatpush.msra.mxu0 %v1119
        %1316 = vmatpush.msra.mxu0 %v1117
        %1317 = vmatpush.msra.mxu0 %v1115
        %1318 = vmatmul.f32.gmra.mxu0 %v1262
        %v1319 = vpop.f32.mrf.mxu0
        %v1320 = vadd.f32 0.0, %v1319
        %1321 = vmatmul.f32.gmra.mxu0 %v1265
        %v1322 = vpop.f32.mrf.mxu0
        %v1323 = vadd.f32 0.0, %v1322
        %1324 = vmatmul.f32.gmra.mxu0 %v1268
        %v1325 = vpop.f32.mrf.mxu0
        %v1326 = vadd.f32 0.0, %v1325
        %1327 = vmatmul.f32.gmra.mxu0 %v1271
        %v1328 = vpop.f32.mrf.mxu0
        %v1329 = vadd.f32 0.0, %v1328
        %1330 = vdwg.mxu0
        %v1331 = vmul.f32 %v1291, %v1134
        %v1332 = vmul.f32 %v1320, %v1135
        %v1333 = vmul.f32 %v1294, %v1136
        %v1334 = vmul.f32 %v1323, %v1137
        %v1335 = vmul.f32 %v1297, %v1138
        %v1336 = vmul.f32 %v1326, %v1139
        %v1337 = vmul.f32 %v1300, %v1140
        %v1338 = vmul.f32 %v1329, %v1141
        %v1339 = vadd.f32 %v1331, %v1333
        %v1340 = vadd.f32 %v1332, %v1334
        %v1341 = vadd.f32 %v1339, %v1335
        %v1342 = vadd.f32 %v1340, %v1336
        %v1343 = vadd.f32 %v1341, %v1337
        %v1344 = vadd.f32 %v1342, %v1338
        %s1345 = scalar_lea.vmem [#allocation8], 66
        %v1346 = vld [vmem:[%s1345] ss:$8 sm:$0x3]
        %s1347 = scalar_lea.vmem [#allocation8], 67
        %v1348 = vld [vmem:[%s1347] ss:$8 sm:$0x3]
        %s1349 = scalar_lea.vmem [#allocation8], 68
        %v1350 = vld [vmem:[%s1349] ss:$8 sm:$0x3]
        %v1351 = vld [vmem:[#allocation8 + $0x40] sm:$0x60]
        %v1352 = vld [vmem:[#allocation8 + $0x48] sm:$0x60]
        %v1353 = vpack.c.bf16 %v1343, %v1343
        %v1354 = vpack.c.bf16 %v1344, %v1344
        %v1355 = vld [vmem:[#allocation10] sm:$0xff]
        %v1356 = vld [vmem:[#allocation10 + $0x8] sm:$0xff]
        %v1357 = vld [vmem:[#allocation10 + $0x10] sm:$0xff]
        %v1358 = vld [vmem:[#allocation10 + $0x18] sm:$0xff]
        %v1359 = vld [vmem:[#allocation10 + $0x20] sm:$0xff]
        %v1360 = vld [vmem:[#allocation10 + $0x28] sm:$0xff]
        %v1361 = vld [vmem:[#allocation10 + $0x30] sm:$0xff]
        %v1362 = vld [vmem:[#allocation10 + $0x38] sm:$0xff]
        %v1363 = vld [vmem:[#allocation10 + $0x40] sm:$0xff]
        %v1364 = vld [vmem:[#allocation10 + $0x48] sm:$0xff]
        %v1365 = vld [vmem:[#allocation10 + $0x50] sm:$0xff]
        %v1366 = vld [vmem:[#allocation10 + $0x58] sm:$0xff]
        %v1367 = vld [vmem:[#allocation10 + $0x60] sm:$0xff]
        %v1368 = vld [vmem:[#allocation10 + $0x68] sm:$0xff]
        %v1369 = vld [vmem:[#allocation10 + $0x70] sm:$0xff]
        %v1370 = vld [vmem:[#allocation10 + $0x78] sm:$0xff]
        %v1371 = vld [vmem:[#allocation10 + $0x80] sm:$0xff]
        %v1372 = vld [vmem:[#allocation10 + $0x88] sm:$0xff]
        %v1373 = vld [vmem:[#allocation10 + $0x90] sm:$0xff]
        %v1374 = vld [vmem:[#allocation10 + $0x98] sm:$0xff]
        %v1375 = vld [vmem:[#allocation10 + $0xa0] sm:$0xff]
        %v1376 = vld [vmem:[#allocation10 + $0xa8] sm:$0xff]
        %v1377 = vld [vmem:[#allocation10 + $0xb0] sm:$0xff]
        %v1378 = vld [vmem:[#allocation10 + $0xb8] sm:$0xff]
        %v1379 = vld [vmem:[#allocation10 + $0xc0] sm:$0xff]
        %v1380 = vld [vmem:[#allocation10 + $0xc8] sm:$0xff]
        %v1381 = vld [vmem:[#allocation10 + $0xd0] sm:$0xff]
        %v1382 = vld [vmem:[#allocation10 + $0xd8] sm:$0xff]
        %v1383 = vld [vmem:[#allocation10 + $0xe0] sm:$0xff]
        %v1384 = vld [vmem:[#allocation10 + $0xe8] sm:$0xff]
        %v1385 = vld [vmem:[#allocation10 + $0xf0] sm:$0xff]
        %v1386 = vld [vmem:[#allocation10 + $0xf8] sm:$0xff]
        %v1388 = vperm.slane %v1346, 0
        %v1389 = vperm.slane %v1346, 1
        %v1424 = vunpack.c.l.b16 %v1355
        %v1425 = vunpack.c.h.b16 %v1355
        %v1426 = vunpack.c.l.b16 %v1356
        %v1427 = vunpack.c.h.b16 %v1356
        %v1428 = vunpack.c.l.b16 %v1357
        %v1429 = vunpack.c.h.b16 %v1357
        %v1430 = vunpack.c.l.b16 %v1358
        %v1431 = vunpack.c.h.b16 %v1358
        %v1432 = vunpack.c.l.b16 %v1359
        %v1433 = vunpack.c.h.b16 %v1359
        %v1434 = vunpack.c.l.b16 %v1360
        %v1435 = vunpack.c.h.b16 %v1360
        %v1436 = vunpack.c.l.b16 %v1361
        %v1437 = vunpack.c.h.b16 %v1361
        %v1438 = vunpack.c.l.b16 %v1362
        %v1439 = vunpack.c.h.b16 %v1362
        %v1440 = vunpack.c.l.b16 %v1363
        %v1441 = vunpack.c.h.b16 %v1363
        %v1442 = vunpack.c.l.b16 %v1364
        %v1443 = vunpack.c.h.b16 %v1364
        %v1444 = vunpack.c.l.b16 %v1365
        %v1445 = vunpack.c.h.b16 %v1365
        %v1446 = vunpack.c.l.b16 %v1366
        %v1447 = vunpack.c.h.b16 %v1366
        %v1448 = vunpack.c.l.b16 %v1367
        %v1449 = vunpack.c.h.b16 %v1367
        %v1450 = vunpack.c.l.b16 %v1368
        %v1451 = vunpack.c.h.b16 %v1368
        %v1452 = vunpack.c.l.b16 %v1369
        %v1453 = vunpack.c.h.b16 %v1369
        %v1454 = vunpack.c.l.b16 %v1370
        %v1455 = vunpack.c.h.b16 %v1370
        %v1456 = vunpack.c.l.b16 %v1371
        %v1457 = vunpack.c.h.b16 %v1371
        %v1458 = vunpack.c.l.b16 %v1372
        %v1459 = vunpack.c.h.b16 %v1372
        %v1460 = vunpack.c.l.b16 %v1373
        %v1461 = vunpack.c.h.b16 %v1373
        %v1462 = vunpack.c.l.b16 %v1374
        %v1463 = vunpack.c.h.b16 %v1374
        %v1464 = vunpack.c.l.b16 %v1375
        %v1465 = vunpack.c.h.b16 %v1375
        %v1466 = vunpack.c.l.b16 %v1376
        %v1467 = vunpack.c.h.b16 %v1376
        %v1468 = vunpack.c.l.b16 %v1377
        %v1469 = vunpack.c.h.b16 %v1377
        %v1470 = vunpack.c.l.b16 %v1378
        %v1471 = vunpack.c.h.b16 %v1378
        %v1472 = vunpack.c.l.b16 %v1379
        %v1473 = vunpack.c.h.b16 %v1379
        %v1474 = vunpack.c.l.b16 %v1380
        %v1475 = vunpack.c.h.b16 %v1380
        %v1476 = vunpack.c.l.b16 %v1381
        %v1477 = vunpack.c.h.b16 %v1381
        %v1478 = vunpack.c.l.b16 %v1382
        %v1479 = vunpack.c.h.b16 %v1382
        %v1480 = vunpack.c.l.b16 %v1383
        %v1481 = vunpack.c.h.b16 %v1383
        %v1482 = vunpack.c.l.b16 %v1384
        %v1483 = vunpack.c.h.b16 %v1384
        %v1484 = vunpack.c.l.b16 %v1385
        %v1485 = vunpack.c.h.b16 %v1385
        %v1486 = vunpack.c.l.b16 %v1386
        %v1487 = vunpack.c.h.b16 %v1386
        %v1488 = vpack.c.b16 %v1426, %v1424
        %v1489 = vpack.c.b16 %v1427, %v1425
        %v1490 = vpack.c.b16 %v1430, %v1428
        %v1491 = vpack.c.b16 %v1431, %v1429
        %v1492 = vpack.c.b16 %v1434, %v1432
        %v1493 = vpack.c.b16 %v1435, %v1433
        %v1494 = vpack.c.b16 %v1438, %v1436
        %v1495 = vpack.c.b16 %v1439, %v1437
        %v1496 = vpack.c.b16 %v1442, %v1440
        %v1497 = vpack.c.b16 %v1443, %v1441
        %v1498 = vpack.c.b16 %v1446, %v1444
        %v1499 = vpack.c.b16 %v1447, %v1445
        %v1500 = vpack.c.b16 %v1450, %v1448
        %v1501 = vpack.c.b16 %v1451, %v1449
        %v1502 = vpack.c.b16 %v1454, %v1452
        %v1503 = vpack.c.b16 %v1455, %v1453
        %v1504 = vpack.c.b16 %v1458, %v1456
        %v1505 = vpack.c.b16 %v1459, %v1457
        %v1506 = vpack.c.b16 %v1462, %v1460
        %v1507 = vpack.c.b16 %v1463, %v1461
        %v1508 = vpack.c.b16 %v1466, %v1464
        %v1509 = vpack.c.b16 %v1467, %v1465
        %v1510 = vpack.c.b16 %v1470, %v1468
        %v1511 = vpack.c.b16 %v1471, %v1469
        %v1512 = vpack.c.b16 %v1474, %v1472
        %v1513 = vpack.c.b16 %v1475, %v1473
        %v1514 = vpack.c.b16 %v1478, %v1476
        %v1515 = vpack.c.b16 %v1479, %v1477
        %v1516 = vpack.c.b16 %v1482, %v1480
        %v1517 = vpack.c.b16 %v1483, %v1481
        %v1518 = vpack.c.b16 %v1486, %v1484
        %v1519 = vpack.c.b16 %v1487, %v1485
        %1552 = vmatpush.bf16.msra.mxu0 %v1502
        %1553 = vmatpush.bf16.msra.mxu0 %v1500
        %1554 = vmatpush.bf16.msra.mxu0 %v1498
        %1555 = vmatpush.bf16.msra.mxu0 %v1496
        %1556 = vmatpush.bf16.msra.mxu0 %v1494
        %1557 = vmatpush.bf16.msra.mxu0 %v1492
        %1558 = vmatpush.bf16.msra.mxu0 %v1490
        %1559 = vmatpush.bf16.msra.mxu0 %v1488
        %1560 = vmatmul.bf16.gmra.mxu0 %v1353
        %v1561 = vpop.f32.mrf.mxu0
        %v1562 = vadd.f32 %v1388, %v1561
        %v1563 = vpop.f32.mrf.mxu0
        %1564 = vdwg.mxu0
        %1565 = vmatpush.bf16.msra.mxu0 %v1518
        %1566 = vmatpush.bf16.msra.mxu0 %v1516
        %1567 = vmatpush.bf16.msra.mxu0 %v1514
        %1568 = vmatpush.bf16.msra.mxu0 %v1512
        %1569 = vmatpush.bf16.msra.mxu0 %v1510
        %1570 = vmatpush.bf16.msra.mxu0 %v1508
        %1571 = vmatpush.bf16.msra.mxu0 %v1506
        %1572 = vmatpush.bf16.msra.mxu0 %v1504
        %1573 = vmatmul.bf16.gmra.mxu0 %v1354
        %v1574 = vpop.f32.mrf.mxu0
        %v1575 = vadd.f32 %v1562, %v1574
        %v1576 = vpop.f32.mrf.mxu0
        %1577 = vdwg.mxu0
        %1578 = vmatpush.bf16.msra.mxu0 %v1503
        %1579 = vmatpush.bf16.msra.mxu0 %v1501
        %1580 = vmatpush.bf16.msra.mxu0 %v1499
        %1581 = vmatpush.bf16.msra.mxu0 %v1497
        %1582 = vmatpush.bf16.msra.mxu0 %v1495
        %1583 = vmatpush.bf16.msra.mxu0 %v1493
        %1584 = vmatpush.bf16.msra.mxu0 %v1491
        %1585 = vmatpush.bf16.msra.mxu0 %v1489
        %1586 = vmatmul.bf16.gmra.mxu0 %v1353
        %v1587 = vpop.f32.mrf.mxu0
        %v1588 = vadd.f32 %v1389, %v1587
        %v1589 = vpop.f32.mrf.mxu0
        %1590 = vdwg.mxu0
        %1591 = vmatpush.bf16.msra.mxu0 %v1519
        %1592 = vmatpush.bf16.msra.mxu0 %v1517
        %1593 = vmatpush.bf16.msra.mxu0 %v1515
        %1594 = vmatpush.bf16.msra.mxu0 %v1513
        %1595 = vmatpush.bf16.msra.mxu0 %v1511
        %1596 = vmatpush.bf16.msra.mxu0 %v1509
        %1597 = vmatpush.bf16.msra.mxu0 %v1507
        %1598 = vmatpush.bf16.msra.mxu0 %v1505
        %1599 = vmatmul.bf16.gmra.mxu0 %v1354
        %v1600 = vpop.f32.mrf.mxu0
        %v1601 = vadd.f32 %v1588, %v1600
        %v1602 = vpop.f32.mrf.mxu0
        %1603 = vdwg.mxu0
        %v1604 = vadd.f32 %v1575, %v1601
        %1605 = vadd.xlane.f32.xlu0 %v1604
        %v1606 = vpop.xlane.xlu0 %1605
        %v1607 = vrcp.pop 256.0
        %v1608 = vmul.f32 256.0, %v1607
        %v1609 = vsub.f32 1.0, %v1608
        %v1610 = vmul.f32 %v1607, %v1609
        %v1611 = vadd.f32 %v1607, %v1610
        %vm1612 = vweird.f32 %v1607
        %v1613 = vsel %vm1612, %v1607, %v1611
        %v1614 = vmul.f32 %v1606, %v1613
        %v1615 = vsub.f32 %v1575, %v1614
        %v1616 = vsub.f32 %v1601, %v1614
        %v1617 = vmul.f32 %v1615, %v1615
        %v1618 = vmul.f32 %v1616, %v1616
        %v1619 = vadd.f32 %v1617, %v1618
        %1620 = vadd.xlane.f32.xlu0 %v1619
        %v1621 = vpop.xlane.xlu0 %1620
        %v1622 = vmul.f32 %v1621, %v1613
        %v1623 = vadd.f32 %v1622, 1e-05
        %v1624 = vrsqrt.pop %v1623
        %v1625 = vmul.f32 %v1624, %v1623
        %v1626 = vmul.f32 %v1625, %v1624
        %v1627 = vmul.f32 0.5, %v1626
        %v1628 = vsub.f32 1.5, %v1627
        %v1629 = vmul.f32 %v1624, %v1628
        %vm1630 = vweird.f32 %v1623
        %vm1631 = vweird.f32 %v1624
        %vm1632 = vmor %vm1630, %vm1631
        %v1633 = vsel %vm1632, %v1624, %v1629
        %v1634 = vmul.f32 %v1615, %v1633
        %v1635 = vmul.f32 %v1616, %v1633
        %v1637 = vperm.slane %v1348, 0
        %v1638 = vperm.slane %v1348, 1
        %v1641 = vmul.f32 %v1634, %v1637
        %v1642 = vmul.f32 %v1635, %v1638
        %v1644 = vperm.slane %v1350, 0
        %v1645 = vperm.slane %v1350, 1
        %v1648 = vadd.f32 %v1641, %v1644
        %v1649 = vadd.f32 %v1642, %v1645
        %v1652 = vrot.slane %v1351, 5
        %v1653 = vrot.slane %v1352, 5
        %1656 = vmatpush.xpose.msra.mxu0 0.0
        %1657 = vmatpush.xpose.msra.mxu0 0.0
        %1658 = vmatpush.xpose.msra.mxu0 0.0
        %1659 = vmatpush.xpose.msra.mxu0 0.0
        %1660 = vmatpush.xpose.msra.mxu0 0.0
        %1661 = vmatpush.xpose.msra.mxu0 0.0
        %1662 = vmatpush.xpose.msra.mxu0 0.0
        %1663 = vmatpush.xpose.msra.mxu0 0.0
        %1664 = vmatpush.xpose.msra.mxu0 0.0
        %1665 = vmatpush.xpose.msra.mxu0 0.0
        %1666 = vmatpush.xpose.msra.mxu0 0.0
        %1667 = vmatpush.xpose.msra.mxu0 0.0
        %1668 = vmatpush.xpose.msra.mxu0 0.0
        %1669 = vmatpush.xpose.msra.mxu0 0.0
        %1670 = vmatpush.xpose.msra.mxu0 0.0
        %1671 = vmatpush.xpose.msra.mxu0 %v1652
        %1672 = vmatmul.f32.gmra.mxu0 %v1648
        %v1673 = vpop.f32.mrf.mxu0
        %v1674 = vadd.f32 0.0, %v1673
        %1675 = vdwg.mxu0
        %1676 = vmatpush.xpose.msra.mxu0 0.0
        %1677 = vmatpush.xpose.msra.mxu0 0.0
        %1678 = vmatpush.xpose.msra.mxu0 0.0
        %1679 = vmatpush.xpose.msra.mxu0 0.0
        %1680 = vmatpush.xpose.msra.mxu0 0.0
        %1681 = vmatpush.xpose.msra.mxu0 0.0
        %1682 = vmatpush.xpose.msra.mxu0 0.0
        %1683 = vmatpush.xpose.msra.mxu0 0.0
        %1684 = vmatpush.xpose.msra.mxu0 0.0
        %1685 = vmatpush.xpose.msra.mxu0 0.0
        %1686 = vmatpush.xpose.msra.mxu0 0.0
        %1687 = vmatpush.xpose.msra.mxu0 0.0
        %1688 = vmatpush.xpose.msra.mxu0 0.0
        %1689 = vmatpush.xpose.msra.mxu0 0.0
        %1690 = vmatpush.xpose.msra.mxu0 0.0
        %1691 = vmatpush.xpose.msra.mxu0 %v1653
        %1692 = vmatmul.f32.gmra.mxu0 %v1649
        %v1693 = vpop.f32.mrf.mxu0
        %v1694 = vadd.f32 %v1674, %v1693
        %1695 = vdwg.mxu0
        %vm1696 = vcmask 15360
        %1697 = vst.msk [vmem:[%s410] sm:$0xff] %vm1696, %v1694
        %1698 = vst.msk [vmem:[%s406] sm:$0xff] %vm1212, %v1260
        %p1699 = scmp.lt.s32.totalorder %s30, 1
        %s1700 = scalar_select %p1699, %s30, 1
        %s1701 = smul.addr %s1700, 8
        %s1702 = scalar_lea.vmem %s6, %s1701
        %s1703 = sand.u32 %s200, 1
        %s1704 = scalar_lea.sflag [#allocation4], %s1703
        %s1705 = sand.u32 %s200, 1
        %s1706 = smul.addr %s1705, 8
        %s1707 = scalar_lea.vmem [#allocation13], %s1706
        // Predicated region
        $region69: #{tpu_custom_call.1} parent=43 // pred_check
          %p1708 = pneg %p184
        $region70: #{tpu_custom_call.1} parent=43 // pred_check_branch
          %1710 = sbr.rel (%p1708) target = $region72
        $region71: #{tpu_custom_call.1} parent=43 // pred_region
          _
        $region72: #{tpu_custom_call.1} parent=43 // pred_fallthru
          _
        // Predicated region
        $region73: #{tpu_custom_call.1} parent=43 // pred_check
          %p1711 = pneg %p210
        $region74: #{tpu_custom_call.1} parent=43 // pred_check_branch
          %1713 = sbr.rel (%p1711) target = $region76
        $region75: #{tpu_custom_call.1} parent=43 // pred_region
          %1715 = vsyncadd %s1704, 0
          %s1716 = smul.addr %s30, 8
          %s1717 = scalar_lea.hbm %s7, %s1716
          %s1719 = sshll.u32 %s1707, 4
          %s1720 = int_to_ptr.vmem [resolvable:$true] %s1719
          %s1721 = sshll.u32 %s1717, 4
          %s1722 = int_to_ptr.hbm [resolvable:$true] %s1721
          %1724 = dma.vmem_to_hbm [thread:$0]  %s1720, 128, %s1722, %s1704
        $region76: #{tpu_custom_call.1} parent=43 // pred_fallthru
          _
      $region44: #{tpu_custom_call.1} parent=5 // pred_fallthru
        _
      %p1725 = scmp.le.s32.totalorder 2, %s25
      // Predicated region
      $region77: #{tpu_custom_call.1} parent=5 // pred_check
        %p1726 = pneg %p1725
      $region78: #{tpu_custom_call.1} parent=5 // pred_check_branch
        %1728 = sbr.rel (%p1726) target = $region80
      $region79: #{tpu_custom_call.1} parent=5 // pred_region
        %s1729 = ssub.s32 %s25, 2
        // Predicated region
        $region81: #{tpu_custom_call.1} parent=79 // pred_check
          %p1730 = pneg %p190
        $region82: #{tpu_custom_call.1} parent=79 // pred_check_branch
          %1732 = sbr.rel (%p1730) target = $region84
        $region83: #{tpu_custom_call.1} parent=79 // pred_region
          %p1733 = scmp.lt.s32.totalorder %s31, 1
          %s1734 = scalar_select %p1733, %s31, 1
          %s1735 = smul.addr %s1734, 8
          %s1736 = scalar_lea.vmem %s6, %s1735
        $region84: #{tpu_custom_call.1} parent=79 // pred_fallthru
          _
        // Predicated region
        $region85: #{tpu_custom_call.1} parent=79 // pred_check
          %p1737 = pneg %p216
        $region86: #{tpu_custom_call.1} parent=79 // pred_check_branch
          %1739 = sbr.rel (%p1737) target = $region88
        $region87: #{tpu_custom_call.1} parent=79 // pred_region
          %s1740 = sand.u32 %s201, 1
          %s1741 = scalar_lea.sflag [#allocation4], %s1740
          %s1742 = sand.u32 %s201, 1
          %s1743 = smul.addr %s1742, 8
          %s1744 = scalar_lea.vmem [#allocation13], %s1743
          %1746 = dma.done %s1741, 128
        $region88: #{tpu_custom_call.1} parent=79 // pred_fallthru
          _
      $region80: #{tpu_custom_call.1} parent=5 // pred_fallthru
        _
    $region6: #{tpu_custom_call.1} parent=1 // loop_footer
      %s29 = sadd.s32 1, %s25
    $region7: #{tpu_custom_call.1} parent=1 // loop_footer_branch
      %24 = sbr.rel target = $region3
    $region8: #{tpu_custom_call.1} parent=1 // loop_exit
      _
    %1747 = vsyncpa [#allocation3], 1
    %s1748 = scalar_lea.sflag [#allocation3], 1
    %1749 = vsyncpa %s1748, 1
    %1750 = vsyncpa [#allocation6], 1
    %s1751 = scalar_lea.sflag [#allocation6], 1
    %1752 = vsyncpa %s1751, 1
    %1753 = vsyncpa [#allocation9], 1
    %1754 = vsyncpa [#allocation12], 1
    %1755 = vsyncpa [#allocation4], 1
    %s1756 = scalar_lea.sflag [#allocation4], 1
    %1757 = vsyncpa %s1756, 1

</llo_original>
